<compile_context>
chip_gen: v7x
topology: tpu7x:2x2x1
jax: 0.10.0
libtpu: 0.0.40
codegen_flags: <defaults>
</compile_context>

<pallas_src>
import jax
import jax.numpy as jnp
from jax.experimental import pallas as pl
from jax.experimental.pallas import tpu as pltpu

D_IN = 2      # (x, t) columns, as produced by _cat_columns([x, t])
H = 32        # hidden width of the MLP surrogate
TN = 1024     # sample tile on the lane axis (multiple of 128)


def _pinn_kernel(xt_ref, sp_ref, w2p_ref, out_ref):
    """Forward MLP u(x,t) + first-order grads (manual VJP with ones cotangent).

    Transposed layout: samples on lanes.
      xt_ref : (D_IN, TN)   X^T tile
      sp_ref : (H, 6)       packed [w1^T (2 cols) | b1 | b2 | w3 | b3*ones]
      w2p_ref: (2H, H)      stacked [W2^T ; W2]
      out_ref: (3, TN)      rows = [u, u_x, u_t]
    """
    Xt = xt_ref[...]                       # (D_IN, TN)
    sp = sp_ref[...]                       # (H, 6)
    w1t0 = sp[:, 0:1]                      # (H,1)  == w1[0, :]
    w1t1 = sp[:, 1:2]                      # (H,1)  == w1[1, :]
    b1c = sp[:, 2:3]                       # (H,1)
    b2c = sp[:, 3:4]                       # (H,1)
    w3c = sp[:, 4:5]                       # (H,1)
    b3v = sp[0:1, 5:6]                     # (1,1)  scalar b3

    w2t = w2p_ref[0:H, :]                  # (H,H)  == W2^T
    w2 = w2p_ref[H:2 * H, :]               # (H,H)  == W2

    x0 = Xt[0:1, :]                        # (1,TN)
    x1 = Xt[1:2, :]                        # (1,TN)

    # ---- forward (all intermediates (H, TN), lane-dense) ----
    # K=2 first layer as VPU broadcast FMAs instead of a padded MXU pass.
    z1 = w1t0 * x0 + w1t1 * x1 + b1c                                   # (H,TN)
    h1 = jnp.tanh(z1)
    z2 = jnp.dot(w2t, h1, preferred_element_type=jnp.float32) + b2c    # MXU
    h2 = jnp.tanh(z2)
    u = jnp.sum(w3c * h2, axis=0, keepdims=True) + b3v                 # (1,TN)

    # ---- reverse mode with ones cotangent (== _grad(u, ., n_order=1)) ----
    g2 = (1.0 - h2 * h2) * w3c                                         # (H,TN)
    g1 = jnp.dot(w2, g2, preferred_element_type=jnp.float32) * (1.0 - h1 * h1)
    gx0 = jnp.sum(w1t0 * g1, axis=0, keepdims=True)                    # du/dx
    gx1 = jnp.sum(w1t1 * g1, axis=0, keepdims=True)                    # du/dt

    # single lane-dense store for all three outputs
    out_ref[...] = jnp.concatenate([u, gx0, gx1], axis=0)              # (3,TN)


@jax.jit
def pinn_forward(X, params):
    """X: [N, 2] float32.  Returns dict(u, u_x, u_t), each [N, 1]."""
    N = X.shape[0]
    w1, b1, w2, b2, w3, b3 = params

    n_tiles = pl.cdiv(N, TN)
    n_pad = n_tiles * TN

    # Layout plumbing in plain XLA (not in the kernel): pad tail, transpose so
    # samples sit on the lane axis, pack the small parameters.
    Xp = jnp.pad(X, ((0, n_pad - N), (0, 0)))
    Xt = Xp.T                                                      # (D_IN, n_pad)
    small_p = jnp.concatenate(
        [w1.T,                                                     # (H, 2)
         b1.reshape(H, 1),
         b2.reshape(H, 1),
         w3.reshape(H, 1),
         jnp.broadcast_to(b3.reshape(1, 1), (H, 1))],
        axis=1)                                                    # (H, 6)
    w2_pack = jnp.concatenate([w2.T, w2], axis=0)                  # (2H, H)

    out = pl.pallas_call(
        _pinn_kernel,
        out_shape=jax.ShapeDtypeStruct((3, n_pad), jnp.float32),
        grid_spec=pltpu.PrefetchScalarGridSpec(
            num_scalar_prefetch=0,
            grid=(n_tiles,),
            in_specs=[
                pl.BlockSpec((D_IN, TN), lambda i: (0, i)),        # X^T tile
                pl.BlockSpec((H, 6), lambda i: (0, 0)),            # packed vectors
                pl.BlockSpec((2 * H, H), lambda i: (0, 0)),        # [W2^T ; W2]
            ],
            out_specs=pl.BlockSpec((3, TN), lambda i: (0, i)),
        ),
        compiler_params=pltpu.CompilerParams(
            dimension_semantics=("parallel",)),
    )(Xt, small_p, w2_pack)

    u = out[0, :N].reshape(N, 1)
    ux = out[1, :N].reshape(N, 1)
    ut = out[2, :N].reshape(N, 1)
    return {"u": u, "u_x": ux, "u_t": ut}


# ---------------- plain-JAX glue mirroring _PINN's static helpers ----------------
def cat_columns(cols):
    return jnp.concatenate(cols, axis=1) if isinstance(cols, (list, tuple)) else cols


def split_columns(X):
    if X.shape[1] == 1:
        return X
    return [X[:, [i]] for i in range(X.shape[1])]


def _init_params(key):
    k1, k2, k3 = jax.random.split(key, 3)
    w1 = jax.random.normal(k1, (D_IN, H), jnp.float32) * 0.5
    b1 = jnp.zeros((1, H), jnp.float32)
    w2 = jax.random.normal(k2, (H, H), jnp.float32) * (1.0 / jnp.sqrt(H))
    b2 = jnp.zeros((1, H), jnp.float32)
    w3 = jax.random.normal(k3, (H, 1), jnp.float32) * (1.0 / jnp.sqrt(H))
    b3 = jnp.zeros((1, 1), jnp.float32)
    return (w1, b1, w2, b2, w3, b3)


def _reference(X, params):
    """Pure-JAX reference: forward + autodiff grads (matches torch.autograd.grad)."""
    w1, b1, w2, b2, w3, b3 = params

    def net(Xs):
        h1 = jnp.tanh(Xs @ w1 + b1)
        h2 = jnp.tanh(h1 @ w2 + b2)
        return h2 @ w3 + b3

    u = net(X)
    gX = jax.grad(lambda Xs: net(Xs).sum())(X)   # ones-cotangent VJP
    return u, gX[:, 0:1], gX[:, 1:2]


if __name__ == "__main__":
    key = jax.random.PRNGKey(0)
    kx, kt, kp = jax.random.split(key, 3)

    N = 2500   # non-multiple of TN -> exercises the pad/slice tail path
    x = jax.random.uniform(kx, (N, 1), jnp.float32)   # spatial coord column
    t = jax.random.uniform(kt, (N, 1), jnp.float32)   # time coord column
    X = cat_columns([x, t])                           # _cat_columns semantics

    params = _init_params(kp)

    out = pinn_forward(X, params)
    jax.block_until_ready(out)

    u_ref, ux_ref, ut_ref = _reference(X, params)
    assert jnp.allclose(out["u"], u_ref, atol=1e-5, rtol=1e-5)
    assert jnp.allclose(out["u_x"], ux_ref, atol=1e-5, rtol=1e-5)
    assert jnp.allclose(out["u_t"], ut_ref, atol=1e-5, rtol=1e-5)

    # TODO(synk): _PINN.forward itself is abstract (raises NotImplementedError);
    # higher-order grads (n_order > 1) would need another fused backprop pass.
    print("KERNEL_OK")
</pallas_src>

<mosaic_0001>
module attributes {stable_mosaic.version = 11 : i64} {
  func.func @_pinn_kernel(%arg0: i32, %arg1: memref<2x1024xf32, #tpu.memory_space<vmem>>, %arg2: memref<32x6xf32, #tpu.memory_space<vmem>>, %arg3: memref<64x32xf32, #tpu.memory_space<vmem>>, %arg4: memref<3x1024xf32, #tpu.memory_space<vmem>>) attributes {dimension_semantics = [#tpu.dimension_semantics<parallel>], iteration_bounds = array<i64: 3>, scalar_prefetch = 0 : i64, scratch_operands = 0 : i64, tpu.core_type = #tpu.core_type<tc>, window_params = [{transform_indices = @transform_0, window_bounds = array<i64: 2, 1024>}, {pipeline_mode = #tpu.pipeline_mode<synchronous>, transform_indices = @transform_1, window_bounds = array<i64: 32, 6>}, {pipeline_mode = #tpu.pipeline_mode<synchronous>, transform_indices = @transform_2, window_bounds = array<i64: 64, 32>}, {transform_indices = @transform_3, window_bounds = array<i64: 3, 1024>}]} {
    %c0 = arith.constant 0 : index
    %c0_0 = arith.constant 0 : index
    %0 = vector.load %arg1[%c0, %c0_0] : memref<2x1024xf32, #tpu.memory_space<vmem>>, vector<2x1024xf32>
    %c0_1 = arith.constant 0 : index
    %c0_2 = arith.constant 0 : index
    %1 = vector.load %arg2[%c0_1, %c0_2] : memref<32x6xf32, #tpu.memory_space<vmem>>, vector<32x6xf32>
    %2 = vector.extract_strided_slice %1 {offsets = [0, 0], sizes = [32, 1], strides = [1, 1]} : vector<32x6xf32> to vector<32x1xf32>
    %3 = vector.extract_strided_slice %1 {offsets = [0, 1], sizes = [32, 1], strides = [1, 1]} : vector<32x6xf32> to vector<32x1xf32>
    %4 = vector.extract_strided_slice %1 {offsets = [0, 2], sizes = [32, 1], strides = [1, 1]} : vector<32x6xf32> to vector<32x1xf32>
    %5 = vector.extract_strided_slice %1 {offsets = [0, 3], sizes = [32, 1], strides = [1, 1]} : vector<32x6xf32> to vector<32x1xf32>
    %6 = vector.extract_strided_slice %1 {offsets = [0, 4], sizes = [32, 1], strides = [1, 1]} : vector<32x6xf32> to vector<32x1xf32>
    %7 = vector.extract_strided_slice %1 {offsets = [0, 5], sizes = [1, 1], strides = [1, 1]} : vector<32x6xf32> to vector<1x1xf32>
    %c0_3 = arith.constant 0 : index
    %c0_4 = arith.constant 0 : index
    %8 = vector.load %arg3[%c0_3, %c0_4] : memref<64x32xf32, #tpu.memory_space<vmem>>, vector<32x32xf32>
    %c32 = arith.constant 32 : index
    %c0_5 = arith.constant 0 : index
    %9 = vector.load %arg3[%c32, %c0_5] : memref<64x32xf32, #tpu.memory_space<vmem>>, vector<32x32xf32>
    %10 = vector.extract_strided_slice %0 {offsets = [0, 0], sizes = [1, 1024], strides = [1, 1]} : vector<2x1024xf32> to vector<1x1024xf32>
    %11 = vector.extract_strided_slice %0 {offsets = [1, 0], sizes = [1, 1024], strides = [1, 1]} : vector<2x1024xf32> to vector<1x1024xf32>
    %12 = vector.broadcast %2 : vector<32x1xf32> to vector<32x1024xf32>
    %13 = vector.broadcast %10 : vector<1x1024xf32> to vector<32x1024xf32>
    %14 = arith.mulf %12, %13 : vector<32x1024xf32>
    %15 = vector.broadcast %3 : vector<32x1xf32> to vector<32x1024xf32>
    %16 = vector.broadcast %11 : vector<1x1024xf32> to vector<32x1024xf32>
    %17 = arith.mulf %15, %16 : vector<32x1024xf32>
    %18 = arith.addf %14, %17 : vector<32x1024xf32>
    %19 = vector.broadcast %4 : vector<32x1xf32> to vector<32x1024xf32>
    %20 = arith.addf %18, %19 : vector<32x1024xf32>
    %21 = math.tanh %20 : vector<32x1024xf32>
    %cst = arith.constant dense<0.000000e+00> : vector<32x1024xf32>
    %22 = tpu.matmul %8, %21, %cst {dimension_numbers = #tpu.dot_dimension_numbers<[1], [0], [0], [1], [0, 0, 1, 1], [], []>} : vector<32x32xf32>, vector<32x1024xf32>, vector<32x1024xf32> -> vector<32x1024xf32>
    %23 = vector.broadcast %5 : vector<32x1xf32> to vector<32x1024xf32>
    %24 = arith.addf %22, %23 : vector<32x1024xf32>
    %25 = math.tanh %24 : vector<32x1024xf32>
    %26 = vector.broadcast %6 : vector<32x1xf32> to vector<32x1024xf32>
    %27 = arith.mulf %26, %25 : vector<32x1024xf32>
    %cst_6 = arith.constant dense<0.000000e+00> : vector<1024xf32>
    %28 = vector.multi_reduction <add>, %27, %cst_6 [0] : vector<32x1024xf32> to vector<1024xf32>
    %29 = vector.shape_cast %28 : vector<1024xf32> to vector<1x1024xf32>
    %30 = vector.broadcast %7 : vector<1x1xf32> to vector<1x1024xf32>
    %31 = arith.addf %29, %30 : vector<1x1024xf32>
    %32 = arith.mulf %25, %25 : vector<32x1024xf32>
    %cst_7 = arith.constant 1.000000e+00 : f32
    %33 = vector.broadcast %cst_7 : f32 to vector<32x1024xf32>
    %34 = arith.subf %33, %32 : vector<32x1024xf32>
    %35 = vector.broadcast %6 : vector<32x1xf32> to vector<32x1024xf32>
    %36 = arith.mulf %34, %35 : vector<32x1024xf32>
    %cst_8 = arith.constant dense<0.000000e+00> : vector<32x1024xf32>
    %37 = tpu.matmul %9, %36, %cst_8 {dimension_numbers = #tpu.dot_dimension_numbers<[1], [0], [0], [1], [0, 0, 1, 1], [], []>} : vector<32x32xf32>, vector<32x1024xf32>, vector<32x1024xf32> -> vector<32x1024xf32>
    %38 = arith.mulf %21, %21 : vector<32x1024xf32>
    %cst_9 = arith.constant 1.000000e+00 : f32
    %39 = vector.broadcast %cst_9 : f32 to vector<32x1024xf32>
    %40 = arith.subf %39, %38 : vector<32x1024xf32>
    %41 = arith.mulf %37, %40 : vector<32x1024xf32>
    %42 = vector.broadcast %2 : vector<32x1xf32> to vector<32x1024xf32>
    %43 = arith.mulf %42, %41 : vector<32x1024xf32>
    %cst_10 = arith.constant dense<0.000000e+00> : vector<1024xf32>
    %44 = vector.multi_reduction <add>, %43, %cst_10 [0] : vector<32x1024xf32> to vector<1024xf32>
    %45 = vector.shape_cast %44 : vector<1024xf32> to vector<1x1024xf32>
    %46 = vector.broadcast %3 : vector<32x1xf32> to vector<32x1024xf32>
    %47 = arith.mulf %46, %41 : vector<32x1024xf32>
    %cst_11 = arith.constant dense<0.000000e+00> : vector<1024xf32>
    %48 = vector.multi_reduction <add>, %47, %cst_11 [0] : vector<32x1024xf32> to vector<1024xf32>
    %49 = vector.shape_cast %48 : vector<1024xf32> to vector<1x1024xf32>
    %50 = tpu.concatenate %31, %45, %49 in 0 : vector<1x1024xf32>, vector<1x1024xf32>, vector<1x1024xf32> -> vector<3x1024xf32>
    %c0_12 = arith.constant 0 : index
    %c0_13 = arith.constant 0 : index
    %51 = vector.load %arg4[%c0_12, %c0_13] : memref<3x1024xf32, #tpu.memory_space<vmem>>, vector<3x1024xf32>
    tpu.vector_store %arg4[%c0_12, %c0_13], %50 {strides = array<i32>} : memref<3x1024xf32, #tpu.memory_space<vmem>>, vector<3x1024xf32>,
    return
  }
  func.func @transform_0(%arg0: i32) -> (i32, i32) {
    %c0_i32 = arith.constant 0 : i32
    %c0_i32_0 = arith.constant 0 : i32
    return %c0_i32, %arg0 : i32, i32
  }
  func.func @transform_1(%arg0: i32) -> (i32, i32) {
    %c0_i32 = arith.constant 0 : i32
    %c0_i32_0 = arith.constant 0 : i32
    %c0_i32_1 = arith.constant 0 : i32
    return %c0_i32, %c0_i32_0 : i32, i32
  }
  func.func @transform_2(%arg0: i32) -> (i32, i32) {
    %c0_i32 = arith.constant 0 : i32
    %c0_i32_0 = arith.constant 0 : i32
    %c0_i32_1 = arith.constant 0 : i32
    return %c0_i32, %c0_i32_0 : i32, i32
  }
  func.func @transform_3(%arg0: i32) -> (i32, i32) {
    %c0_i32 = arith.constant 0 : i32
    %c0_i32_0 = arith.constant 0 : i32
    return %c0_i32, %arg0 : i32, i32
  }
}

</mosaic_0001>

<llo_original>
// kernel: pinn_forward.1
$region0: #{pinn_forward.1}
  #allocation0 [shape = 'u32[]', space=smem, size = 0x4, offset = 0x4, fixed_abs, tag = 'smem constant byte address 0x4 - core index']
  #allocation1 [shape = 'u32[144,128]{1,0:T(1,128)}', space=vmem, size = 0x12000, scoped, tag = 'internal scratch']
  %s0 = inlined_call_operand.vmem [shape: f32[2,3072], index: 0, kind: input, shape index: {}]
  %s1 = inlined_call_operand.vmem [shape: f32[32,6], index: 1, kind: input, shape index: {}]
  %s2 = inlined_call_operand.vmem [shape: f32[64,32], index: 2, kind: input, shape index: {}]
  %s3 = inlined_call_operand.vmem [shape: f32[3,3072], index: 3, kind: output, shape index: {}]
  %s4 = sld [smem:[#allocation0]]
  $region45: #{pinn_forward.1} parent=0
    _
  %s6 = ssub.s32 1, %s4
  %s7 = scalar_select 0, %s6, %s4
  loop: start=0, step=1, limit=5
  $region2: #{pinn_forward.1} parent=0 // loop_pre_header
    _
  $region3: #{pinn_forward.1} parent=0 // loop_header
    %s9 = sphi 0, %s13
    %p10 = scmp.ge.s32.totalorder %s9, 5
    %s19 = sphi 0, %s21
    %s22 = sphi 0, %s19
    %s23 = sphi 0, %s22
    %s39 = sphi 0, %s23
    %s43 = sphi 0, %s43
    %s45 = sphi 0, %s43
    %s46 = sphi 0, %s45
    %s60 = sphi 0, %s46
    %s64 = sphi 0, %s64
    %s66 = sphi 0, %s64
    %s67 = sphi 0, %s66
    %s81 = sphi 0, %s67
    %s87 = sphi 0, %s89
    %s90 = sphi 0, %s87
    %s91 = sphi 0, %s90
    %s107 = sphi 0, %s91
  $region4: #{pinn_forward.1} parent=0 // loop_header_branch
    %12 = sbr.rel (%p10) target = $region8
  $region5: #{pinn_forward.1} parent=0 // loop_body
    %s14 = ssub.s32 %s9, 1
    %s15 = ssub.s32 %s9, 2
    %s16 = sadd.s32 %s9, 1
    %s17 = ssub.s32 %s9, %s16
    %p18 = scmp.eq.s32.totalorder %s17, 0
    %s20 = sadd.s32 %s19, 1
    %s21 = scalar_select %p18, %s19, %s20
    %p24 = pneg %p18
    %p25 = scmp.eq.s32.totalorder %s9, 2
    %p26 = por %p24, %p25
    %p27 = scmp.ne.s32.totalorder %s19, %s22
    %p28 = scmp.eq.s32.totalorder %s9, 0
    %p29 = por %p27, %p28
    %p30 = scmp.ne.s32.totalorder %s19, %s22
    %p31 = scmp.eq.s32.totalorder %s14, 2
    %p32 = por %p30, %p31
    %p33 = scmp.ne.s32.totalorder %s22, %s23
    %p34 = scmp.eq.s32.totalorder %s14, 0
    %p35 = por %p33, %p34
    %p36 = scmp.ne.s32.totalorder %s22, %s23
    %p37 = scmp.eq.s32.totalorder %s15, 2
    %p38 = por %p36, %p37
    %p40 = scmp.ne.s32.totalorder %s23, %s39
    %p41 = scmp.eq.s32.totalorder %s15, 0
    %p42 = por %p40, %p41
    %s44 = sadd.s32 %s43, 1
    %p47 = scmp.eq.s32.totalorder %s9, 2
    %p48 = scmp.ne.s32.totalorder %s43, %s45
    %p49 = scmp.eq.s32.totalorder %s9, 0
    %p50 = por %p48, %p49
    %p51 = scmp.ne.s32.totalorder %s43, %s45
    %p52 = scmp.eq.s32.totalorder %s14, 2
    %p53 = por %p51, %p52
    %p54 = scmp.ne.s32.totalorder %s45, %s46
    %p55 = scmp.eq.s32.totalorder %s14, 0
    %p56 = por %p54, %p55
    %p57 = scmp.ne.s32.totalorder %s45, %s46
    %p58 = scmp.eq.s32.totalorder %s15, 2
    %p59 = por %p57, %p58
    %p61 = scmp.ne.s32.totalorder %s46, %s60
    %p62 = scmp.eq.s32.totalorder %s15, 0
    %p63 = por %p61, %p62
    %s65 = sadd.s32 %s64, 1
    %p68 = scmp.eq.s32.totalorder %s9, 2
    %p69 = scmp.ne.s32.totalorder %s64, %s66
    %p70 = scmp.eq.s32.totalorder %s9, 0
    %p71 = por %p69, %p70
    %p72 = scmp.ne.s32.totalorder %s64, %s66
    %p73 = scmp.eq.s32.totalorder %s14, 2
    %p74 = por %p72, %p73
    %p75 = scmp.ne.s32.totalorder %s66, %s67
    %p76 = scmp.eq.s32.totalorder %s14, 0
    %p77 = por %p75, %p76
    %p78 = scmp.ne.s32.totalorder %s66, %s67
    %p79 = scmp.eq.s32.totalorder %s15, 2
    %p80 = por %p78, %p79
    %p82 = scmp.ne.s32.totalorder %s67, %s81
    %p83 = scmp.eq.s32.totalorder %s15, 0
    %p84 = por %p82, %p83
    %s85 = ssub.s32 %s9, %s16
    %p86 = scmp.eq.s32.totalorder %s85, 0
    %s88 = sadd.s32 %s87, 1
    %s89 = scalar_select %p86, %s87, %s88
    %p92 = pneg %p86
    %p93 = scmp.eq.s32.totalorder %s9, 2
    %p94 = por %p92, %p93
    %p95 = scmp.ne.s32.totalorder %s87, %s90
    %p96 = scmp.eq.s32.totalorder %s9, 0
    %p97 = por %p95, %p96
    %p98 = scmp.ne.s32.totalorder %s87, %s90
    %p99 = scmp.eq.s32.totalorder %s14, 2
    %p100 = por %p98, %p99
    %p101 = scmp.ne.s32.totalorder %s90, %s91
    %p102 = scmp.eq.s32.totalorder %s14, 0
    %p103 = por %p101, %p102
    %p104 = scmp.ne.s32.totalorder %s90, %s91
    %p105 = scmp.eq.s32.totalorder %s15, 2
    %p106 = por %p104, %p105
    %p108 = scmp.ne.s32.totalorder %s91, %s107
    %p109 = scmp.eq.s32.totalorder %s15, 0
    %p110 = por %p108, %p109
    %p111 = scmp.le.s32.totalorder 1, %s9
    %p112 = scmp.lt.s32.totalorder %s9, 4
    %p113 = pnand %p111, %p112
    %p114 = pneg %p113
    // Predicated region
    $region9: #{pinn_forward.1} parent=5 // pred_check
      _
    $region10: #{pinn_forward.1} parent=5 // pred_check_branch
      %116 = sbr.rel (%p113) target = $region12
    $region11: #{pinn_forward.1} parent=5 // pred_region
      %s117 = ssub.s32 %s9, 1
      // Predicated region
      $region13: #{pinn_forward.1} parent=11 // pred_check
        %p118 = pneg %p56
      $region14: #{pinn_forward.1} parent=11 // pred_check_branch
        %120 = sbr.rel (%p118) target = $region16
      $region15: #{pinn_forward.1} parent=11 // pred_region
        _
      $region16: #{pinn_forward.1} parent=11 // pred_fallthru
        _
      // Predicated region
      $region17: #{pinn_forward.1} parent=11 // pred_check
        %p121 = pneg %p77
      $region18: #{pinn_forward.1} parent=11 // pred_check_branch
        %123 = sbr.rel (%p121) target = $region20
      $region19: #{pinn_forward.1} parent=11 // pred_region
        _
      $region20: #{pinn_forward.1} parent=11 // pred_fallthru
        _
    $region12: #{pinn_forward.1} parent=5 // pred_fallthru
      _
    %p124 = scmp.lt.s32.totalorder %s9, 3
    // Predicated region
    $region21: #{pinn_forward.1} parent=5 // pred_check
      %p125 = pneg %p124
    $region22: #{pinn_forward.1} parent=5 // pred_check_branch
      %127 = sbr.rel (%p125) target = $region24
    $region23: #{pinn_forward.1} parent=5 // pred_region
      // Predicated region
      $region25: #{pinn_forward.1} parent=23 // pred_check
        %p128 = pneg %p29
      $region26: #{pinn_forward.1} parent=23 // pred_check_branch
        %130 = sbr.rel (%p128) target = $region28
      $region27: #{pinn_forward.1} parent=23 // pred_region
        %s131 = smul.u32 8, %s9
        %p132 = scmp.lt.s32.totalorder %s131, 23
        %s133 = scalar_select %p132, %s131, 23
        %s134 = smul.addr %s133, 2
        %s135 = scalar_lea.vmem %s0, %s134
        %s136 = smul.u32 8, %s9
      $region28: #{pinn_forward.1} parent=23 // pred_fallthru
        _
    $region24: #{pinn_forward.1} parent=5 // pred_fallthru
      _
    %p137 = scmp.le.s32.totalorder 1, %s9
    %p138 = scmp.lt.s32.totalorder %s9, 4
    %p139 = pnand %p137, %p138
    %p140 = pneg %p139
    // Predicated region
    $region29: #{pinn_forward.1} parent=5 // pred_check
      _
    $region30: #{pinn_forward.1} parent=5 // pred_check_branch
      %142 = sbr.rel (%p139) target = $region32
    $region31: #{pinn_forward.1} parent=5 // pred_region
      %s143 = ssub.s32 %s9, 1
      %s144 = smul.u32 8, %s14
      %p145 = scmp.lt.s32.totalorder %s144, 23
      %s146 = scalar_select %p145, %s144, 23
      %s147 = smul.addr %s146, 2
      %s148 = scalar_lea.vmem %s0, %s147
      %p149 = pneg %p35
      %p150 = pneg %p32
      %p151 = pneg %p56
      %p152 = pneg %p53
      %p153 = pneg %p77
      %p154 = pneg %p74
      %p155 = pneg %p103
      %p156 = pneg %p100
      %s157 = smul.u32 8, %s14
      %p158 = scmp.lt.s32.totalorder %s157, 23
      %s159 = scalar_select %p158, %s157, 23
      %s160 = smul.addr %s159, 4
      %s161 = scalar_lea.vmem %s3, %s160
      %s162 = smul.u32 8, %s14
      %p163 = scmp.lt.s32.totalorder %s162, 23
      %s164 = scalar_select %p163, %s162, 23
      %s165 = smul.addr %s164, 2
      %s166 = scalar_lea.vmem %s0, %s165
      %s167 = smul.u32 8, %s14
      %s168 = smul.u32 8, %s14
      %p169 = scmp.lt.s32.totalorder %s168, 23
      %s170 = scalar_select %p169, %s168, 23
      %s171 = smul.addr %s170, 4
      %s172 = scalar_lea.vmem %s3, %s171
      %s173 = smul.u32 8, %s14
      %v174 = vld [vmem:[%s166] sm:$0xff]
      %v175 = vld [vmem:[%s166 + $0x8] sm:$0xff]
      %v176 = vld [vmem:[%s1] sm:$0xff]
      %v177 = vld [vmem:[%s1 + $0x8] sm:$0xff]
      %v178 = vld [vmem:[%s1 + $0x10] sm:$0xff]
      %v179 = vld [vmem:[%s1 + $0x18] sm:$0xff]
      %v180 = vld [vmem:[%s2] sm:$0xff]
      %v181 = vld [vmem:[%s2 + $0x8] sm:$0xff]
      %v182 = vld [vmem:[%s2 + $0x10] sm:$0xff]
      %v183 = vld [vmem:[%s2 + $0x18] sm:$0xff]
      %v184 = vld [vmem:[%s2 + $0x20] sm:$0xff]
      %v185 = vld [vmem:[%s2 + $0x28] sm:$0xff]
      %v186 = vld [vmem:[%s2 + $0x30] sm:$0xff]
      %v187 = vld [vmem:[%s2 + $0x38] sm:$0xff]
      %189 = vset.pattern.permute.xlu0 0
      %190 = vperm.xlu0 %189, %v176
      %v191 = vpop.permute.xlu0 %190
      %194 = vset.pattern.permute.xlu0 0
      %195 = vperm.xlu0 %194, %v177
      %v196 = vpop.permute.xlu0 %195
      %199 = vset.pattern.permute.xlu0 0
      %200 = vperm.xlu0 %199, %v178
      %v201 = vpop.permute.xlu0 %200
      %204 = vset.pattern.permute.xlu0 0
      %205 = vperm.xlu0 %204, %v179
      %v206 = vpop.permute.xlu0 %205
      %v210 = vlaneseq
      %v211 = vshrl.u32 %v210, 7
      %v212 = vsub.s32 0, %v211
      %v213 = vrot.slane %v174, %v212
      %v214 = vlaneseq
      %v215 = vshrl.u32 %v214, 7
      %v216 = vsub.s32 2, %v215
      %v217 = vrot.slane %v174, %v216
      %v218 = vlaneseq
      %v219 = vshrl.u32 %v218, 7
      %v220 = vsub.s32 4, %v219
      %v221 = vrot.slane %v174, %v220
      %v222 = vlaneseq
      %v223 = vshrl.u32 %v222, 7
      %v224 = vsub.s32 6, %v223
      %v225 = vrot.slane %v174, %v224
      %v226 = vlaneseq
      %v227 = vshrl.u32 %v226, 7
      %v228 = vsub.s32 0, %v227
      %v229 = vrot.slane %v175, %v228
      %v230 = vlaneseq
      %v231 = vshrl.u32 %v230, 7
      %v232 = vsub.s32 2, %v231
      %v233 = vrot.slane %v175, %v232
      %v234 = vlaneseq
      %v235 = vshrl.u32 %v234, 7
      %v236 = vsub.s32 4, %v235
      %v237 = vrot.slane %v175, %v236
      %v238 = vlaneseq
      %v239 = vshrl.u32 %v238, 7
      %v240 = vsub.s32 6, %v239
      %v241 = vrot.slane %v175, %v240
      %v250 = vlaneseq
      %v251 = vshrl.u32 %v250, 7
      %v252 = vsub.s32 0, %v251
      %v253 = vrot.slane %v213, %v252
      %v254 = vlaneseq
      %v255 = vshrl.u32 %v254, 7
      %v256 = vsub.s32 0, %v255
      %v257 = vrot.slane %v217, %v256
      %v258 = vlaneseq
      %v259 = vshrl.u32 %v258, 7
      %v260 = vsub.s32 0, %v259
      %v261 = vrot.slane %v221, %v260
      %v262 = vlaneseq
      %v263 = vshrl.u32 %v262, 7
      %v264 = vsub.s32 0, %v263
      %v265 = vrot.slane %v225, %v264
      %v266 = vlaneseq
      %v267 = vshrl.u32 %v266, 7
      %v268 = vsub.s32 0, %v267
      %v269 = vrot.slane %v229, %v268
      %v270 = vlaneseq
      %v271 = vshrl.u32 %v270, 7
      %v272 = vsub.s32 0, %v271
      %v273 = vrot.slane %v233, %v272
      %v274 = vlaneseq
      %v275 = vshrl.u32 %v274, 7
      %v276 = vsub.s32 0, %v275
      %v277 = vrot.slane %v237, %v276
      %v278 = vlaneseq
      %v279 = vshrl.u32 %v278, 7
      %v280 = vsub.s32 0, %v279
      %v281 = vrot.slane %v241, %v280
      %v282 = vmul.f32 %v191, %v253
      %v283 = vmul.f32 %v191, %v257
      %v284 = vmul.f32 %v191, %v261
      %v285 = vmul.f32 %v191, %v265
      %v286 = vmul.f32 %v191, %v269
      %v287 = vmul.f32 %v191, %v273
      %v288 = vmul.f32 %v191, %v277
      %v289 = vmul.f32 %v191, %v281
      %v290 = vmul.f32 %v196, %v253
      %v291 = vmul.f32 %v196, %v257
      %v292 = vmul.f32 %v196, %v261
      %v293 = vmul.f32 %v196, %v265
      %v294 = vmul.f32 %v196, %v269
      %v295 = vmul.f32 %v196, %v273
      %v296 = vmul.f32 %v196, %v277
      %v297 = vmul.f32 %v196, %v281
      %v298 = vmul.f32 %v201, %v253
      %v299 = vmul.f32 %v201, %v257
      %v300 = vmul.f32 %v201, %v261
      %v301 = vmul.f32 %v201, %v265
      %v302 = vmul.f32 %v201, %v269
      %v303 = vmul.f32 %v201, %v273
      %v304 = vmul.f32 %v201, %v277
      %v305 = vmul.f32 %v201, %v281
      %v306 = vmul.f32 %v206, %v253
      %v307 = vmul.f32 %v206, %v257
      %v308 = vmul.f32 %v206, %v261
      %v309 = vmul.f32 %v206, %v265
      %v310 = vmul.f32 %v206, %v269
      %v311 = vmul.f32 %v206, %v273
      %v312 = vmul.f32 %v206, %v277
      %v313 = vmul.f32 %v206, %v281
      %314 = vset.pattern.permute.xlu0 1
      %315 = vperm.xlu0 %314, %v176
      %v316 = vpop.permute.xlu0 %315
      %318 = vset.pattern.permute.xlu0 1
      %319 = vperm.xlu0 %318, %v177
      %v320 = vpop.permute.xlu0 %319
      %322 = vset.pattern.permute.xlu0 1
      %323 = vperm.xlu0 %322, %v178
      %v324 = vpop.permute.xlu0 %323
      %326 = vset.pattern.permute.xlu0 1
      %327 = vperm.xlu0 %326, %v179
      %v328 = vpop.permute.xlu0 %327
      %v330 = vlaneseq
      %v331 = vshrl.u32 %v330, 7
      %v332 = vsub.s32 1, %v331
      %v333 = vrot.slane %v174, %v332
      %v334 = vlaneseq
      %v335 = vshrl.u32 %v334, 7
      %v336 = vsub.s32 3, %v335
      %v337 = vrot.slane %v174, %v336
      %v338 = vlaneseq
      %v339 = vshrl.u32 %v338, 7
      %v340 = vsub.s32 5, %v339
      %v341 = vrot.slane %v174, %v340
      %v342 = vlaneseq
      %v343 = vshrl.u32 %v342, 7
      %v344 = vsub.s32 7, %v343
      %v345 = vrot.slane %v174, %v344
      %v346 = vlaneseq
      %v347 = vshrl.u32 %v346, 7
      %v348 = vsub.s32 1, %v347
      %v349 = vrot.slane %v175, %v348
      %v350 = vlaneseq
      %v351 = vshrl.u32 %v350, 7
      %v352 = vsub.s32 3, %v351
      %v353 = vrot.slane %v175, %v352
      %v354 = vlaneseq
      %v355 = vshrl.u32 %v354, 7
      %v356 = vsub.s32 5, %v355
      %v357 = vrot.slane %v175, %v356
      %v358 = vlaneseq
      %v359 = vshrl.u32 %v358, 7
      %v360 = vsub.s32 7, %v359
      %v361 = vrot.slane %v175, %v360
      %v370 = vlaneseq
      %v371 = vshrl.u32 %v370, 7
      %v372 = vsub.s32 1, %v371
      %v373 = vrot.slane %v333, %v372
      %v374 = vlaneseq
      %v375 = vshrl.u32 %v374, 7
      %v376 = vsub.s32 1, %v375
      %v377 = vrot.slane %v337, %v376
      %v378 = vlaneseq
      %v379 = vshrl.u32 %v378, 7
      %v380 = vsub.s32 1, %v379
      %v381 = vrot.slane %v341, %v380
      %v382 = vlaneseq
      %v383 = vshrl.u32 %v382, 7
      %v384 = vsub.s32 1, %v383
      %v385 = vrot.slane %v345, %v384
      %v386 = vlaneseq
      %v387 = vshrl.u32 %v386, 7
      %v388 = vsub.s32 1, %v387
      %v389 = vrot.slane %v349, %v388
      %v390 = vlaneseq
      %v391 = vshrl.u32 %v390, 7
      %v392 = vsub.s32 1, %v391
      %v393 = vrot.slane %v353, %v392
      %v394 = vlaneseq
      %v395 = vshrl.u32 %v394, 7
      %v396 = vsub.s32 1, %v395
      %v397 = vrot.slane %v357, %v396
      %v398 = vlaneseq
      %v399 = vshrl.u32 %v398, 7
      %v400 = vsub.s32 1, %v399
      %v401 = vrot.slane %v361, %v400
      %v402 = vmul.f32 %v316, %v373
      %v403 = vmul.f32 %v316, %v377
      %v404 = vmul.f32 %v316, %v381
      %v405 = vmul.f32 %v316, %v385
      %v406 = vmul.f32 %v316, %v389
      %v407 = vmul.f32 %v316, %v393
      %v408 = vmul.f32 %v316, %v397
      %v409 = vmul.f32 %v316, %v401
      %v410 = vmul.f32 %v320, %v373
      %v411 = vmul.f32 %v320, %v377
      %v412 = vmul.f32 %v320, %v381
      %v413 = vmul.f32 %v320, %v385
      %v414 = vmul.f32 %v320, %v389
      %v415 = vmul.f32 %v320, %v393
      %v416 = vmul.f32 %v320, %v397
      %v417 = vmul.f32 %v320, %v401
      %v418 = vmul.f32 %v324, %v373
      %v419 = vmul.f32 %v324, %v377
      %v420 = vmul.f32 %v324, %v381
      %v421 = vmul.f32 %v324, %v385
      %v422 = vmul.f32 %v324, %v389
      %v423 = vmul.f32 %v324, %v393
      %v424 = vmul.f32 %v324, %v397
      %v425 = vmul.f32 %v324, %v401
      %v426 = vmul.f32 %v328, %v373
      %v427 = vmul.f32 %v328, %v377
      %v428 = vmul.f32 %v328, %v381
      %v429 = vmul.f32 %v328, %v385
      %v430 = vmul.f32 %v328, %v389
      %v431 = vmul.f32 %v328, %v393
      %v432 = vmul.f32 %v328, %v397
      %v433 = vmul.f32 %v328, %v401
      %v434 = vadd.f32 %v282, %v402
      %v435 = vadd.f32 %v283, %v403
      %v436 = vadd.f32 %v284, %v404
      %v437 = vadd.f32 %v285, %v405
      %v438 = vadd.f32 %v286, %v406
      %v439 = vadd.f32 %v287, %v407
      %v440 = vadd.f32 %v288, %v408
      %v441 = vadd.f32 %v289, %v409
      %v442 = vadd.f32 %v290, %v410
      %v443 = vadd.f32 %v291, %v411
      %v444 = vadd.f32 %v292, %v412
      %v445 = vadd.f32 %v293, %v413
      %v446 = vadd.f32 %v294, %v414
      %v447 = vadd.f32 %v295, %v415
      %v448 = vadd.f32 %v296, %v416
      %v449 = vadd.f32 %v297, %v417
      %v450 = vadd.f32 %v298, %v418
      %v451 = vadd.f32 %v299, %v419
      %v452 = vadd.f32 %v300, %v420
      %v453 = vadd.f32 %v301, %v421
      %v454 = vadd.f32 %v302, %v422
      %v455 = vadd.f32 %v303, %v423
      %v456 = vadd.f32 %v304, %v424
      %v457 = vadd.f32 %v305, %v425
      %v458 = vadd.f32 %v306, %v426
      %v459 = vadd.f32 %v307, %v427
      %v460 = vadd.f32 %v308, %v428
      %v461 = vadd.f32 %v309, %v429
      %v462 = vadd.f32 %v310, %v430
      %v463 = vadd.f32 %v311, %v431
      %v464 = vadd.f32 %v312, %v432
      %v465 = vadd.f32 %v313, %v433
      %466 = vset.pattern.permute.xlu0 2
      %467 = vperm.xlu0 %466, %v176
      %v468 = vpop.permute.xlu0 %467
      %470 = vset.pattern.permute.xlu0 2
      %471 = vperm.xlu0 %470, %v177
      %v472 = vpop.permute.xlu0 %471
      %474 = vset.pattern.permute.xlu0 2
      %475 = vperm.xlu0 %474, %v178
      %v476 = vpop.permute.xlu0 %475
      %478 = vset.pattern.permute.xlu0 2
      %479 = vperm.xlu0 %478, %v179
      %v480 = vpop.permute.xlu0 %479
      %v482 = vadd.f32 %v434, %v468
      %v483 = vadd.f32 %v435, %v468
      %v484 = vadd.f32 %v436, %v468
      %v485 = vadd.f32 %v437, %v468
      %v486 = vadd.f32 %v438, %v468
      %v487 = vadd.f32 %v439, %v468
      %v488 = vadd.f32 %v440, %v468
      %v489 = vadd.f32 %v441, %v468
      %v490 = vadd.f32 %v442, %v472
      %v491 = vadd.f32 %v443, %v472
      %v492 = vadd.f32 %v444, %v472
      %v493 = vadd.f32 %v445, %v472
      %v494 = vadd.f32 %v446, %v472
      %v495 = vadd.f32 %v447, %v472
      %v496 = vadd.f32 %v448, %v472
      %v497 = vadd.f32 %v449, %v472
      %v498 = vadd.f32 %v450, %v476
      %v499 = vadd.f32 %v451, %v476
      %v500 = vadd.f32 %v452, %v476
      %v501 = vadd.f32 %v453, %v476
      %v502 = vadd.f32 %v454, %v476
      %v503 = vadd.f32 %v455, %v476
      %v504 = vadd.f32 %v456, %v476
      %v505 = vadd.f32 %v457, %v476
      %v506 = vadd.f32 %v458, %v480
      %v507 = vadd.f32 %v459, %v480
      %v508 = vadd.f32 %v460, %v480
      %v509 = vadd.f32 %v461, %v480
      %v510 = vadd.f32 %v462, %v480
      %v511 = vadd.f32 %v463, %v480
      %v512 = vadd.f32 %v464, %v480
      %v513 = vadd.f32 %v465, %v480
      %v514 = vtanh.pop %v482
      %v515 = vtanh.pop %v483
      %v516 = vtanh.pop %v484
      %v517 = vtanh.pop %v485
      %v518 = vtanh.pop %v486
      %v519 = vtanh.pop %v487
      %v520 = vtanh.pop %v488
      %v521 = vtanh.pop %v489
      %v522 = vtanh.pop %v490
      %v523 = vtanh.pop %v491
      %v524 = vtanh.pop %v492
      %v525 = vtanh.pop %v493
      %v526 = vtanh.pop %v494
      %v527 = vtanh.pop %v495
      %v528 = vtanh.pop %v496
      %v529 = vtanh.pop %v497
      %v530 = vtanh.pop %v498
      %v531 = vtanh.pop %v499
      %v532 = vtanh.pop %v500
      %v533 = vtanh.pop %v501
      %v534 = vtanh.pop %v502
      %v535 = vtanh.pop %v503
      %v536 = vtanh.pop %v504
      %v537 = vtanh.pop %v505
      %v538 = vtanh.pop %v506
      %v539 = vtanh.pop %v507
      %v540 = vtanh.pop %v508
      %v541 = vtanh.pop %v509
      %v542 = vtanh.pop %v510
      %v543 = vtanh.pop %v511
      %v544 = vtanh.pop %v512
      %v545 = vtanh.pop %v513
      %546 = vset.pattern.permute.xlu0 3
      %547 = vperm.xlu0 %546, %v176
      %v548 = vpop.permute.xlu0 %547
      %550 = vset.pattern.permute.xlu0 3
      %551 = vperm.xlu0 %550, %v177
      %v552 = vpop.permute.xlu0 %551
      %554 = vset.pattern.permute.xlu0 3
      %555 = vperm.xlu0 %554, %v178
      %v556 = vpop.permute.xlu0 %555
      %558 = vset.pattern.permute.xlu0 3
      %559 = vperm.xlu0 %558, %v179
      %v560 = vpop.permute.xlu0 %559
      %vm562 = vcmask 261120
      %v564 = vsel %vm562, %v180, 0
      %v567 = vsel %vm562, %v181, 0
      %v570 = vsel %vm562, %v182, 0
      %v573 = vsel %vm562, %v183, 0
      %575 = vmatprep.subr.mxu0 %v515
      %576 = vmatpush1.msra.mxu0 %v514
      %577 = vmatprep.subr.mxu0 %v523
      %578 = vmatpush1.msra.mxu0 %v522
      %579 = vmatprep.subr.mxu0 %v531
      %580 = vmatpush1.msra.mxu0 %v530
      %581 = vmatprep.subr.mxu0 %v539
      %582 = vmatpush1.msra.mxu0 %v538
      %583 = vmatprep.subr.mxu0 0.0
      %584 = vmatpush1.msra.mxu0 0.0
      %585 = vmatprep.subr.mxu0 0.0
      %586 = vmatpush1.msra.mxu0 0.0
      %587 = vmatprep.subr.mxu0 0.0
      %588 = vmatpush1.msra.mxu0 0.0
      %589 = vmatprep.subr.mxu0 0.0
      %590 = vmatpush1.msra.mxu0 0.0
      %591 = vmatprep.subr.mxu0 0.0
      %592 = vmatpush1.msra.mxu0 0.0
      %593 = vmatprep.subr.mxu0 0.0
      %594 = vmatpush1.msra.mxu0 0.0
      %595 = vmatprep.subr.mxu0 0.0
      %596 = vmatpush1.msra.mxu0 0.0
      %597 = vmatprep.subr.mxu0 0.0
      %598 = vmatpush1.msra.mxu0 0.0
      %599 = vmatprep.subr.mxu0 0.0
      %600 = vmatpush1.msra.mxu0 0.0
      %601 = vmatprep.subr.mxu0 0.0
      %602 = vmatpush1.msra.mxu0 0.0
      %603 = vmatprep.subr.mxu0 0.0
      %604 = vmatpush1.msra.mxu0 0.0
      %605 = vmatprep.subr.mxu0 0.0
      %606 = vmatpush1.msra.mxu0 0.0
      %607 = vmatprep.subr.mxu0 0.0
      %608 = vmatpush1.msra.mxu0 0.0
      %609 = vmatprep.subr.mxu0 0.0
      %610 = vmatpush1.msra.mxu0 0.0
      %611 = vmatprep.subr.mxu0 0.0
      %612 = vmatpush1.msra.mxu0 0.0
      %613 = vmatprep.subr.mxu0 0.0
      %614 = vmatpush1.msra.mxu0 0.0
      %615 = vmatprep.subr.mxu0 0.0
      %616 = vmatpush1.msra.mxu0 0.0
      %617 = vmatprep.subr.mxu0 0.0
      %618 = vmatpush1.msra.mxu0 0.0
      %619 = vmatprep.subr.mxu0 0.0
      %620 = vmatpush1.msra.mxu0 0.0
      %621 = vmatprep.subr.mxu0 0.0
      %622 = vmatpush1.msra.mxu0 0.0
      %623 = vmatprep.subr.mxu0 0.0
      %624 = vmatpush1.msra.mxu0 0.0
      %625 = vmatprep.subr.mxu0 0.0
      %626 = vmatpush1.msra.mxu0 0.0
      %627 = vmatprep.subr.mxu0 0.0
      %628 = vmatpush1.msra.mxu0 0.0
      %629 = vmatprep.subr.mxu0 0.0
      %630 = vmatpush1.msra.mxu0 0.0
      %631 = vmatprep.subr.mxu0 0.0
      %632 = vmatpush1.msra.mxu0 0.0
      %633 = vmatprep.subr.mxu0 0.0
      %634 = vmatpush1.msra.mxu0 0.0
      %635 = vmatprep.subr.mxu0 0.0
      %636 = vmatpush1.msra.mxu0 0.0
      %637 = vmatprep.subr.mxu0 0.0
      %638 = vmatpush1.msra.mxu0 0.0
      %639 = vmatprep.mubr.f32.mxu0 0.0
      %640 = vmatmul.mubr.f32.gmra.mrb[0].mxu0 %v564
      %v641 = vpop.f32.mrb[0].mxu0
      %v642 = vadd.f32 %v548, %v641
      %v643 = vpop.f32.mrb[0].mxu0
      %v644 = vadd.f32 %v548, %v643
      %645 = vmatprep.mubr.f32.mxu0 0.0
      %646 = vmatmul.mubr.f32.gmra.mrb[0].mxu0 %v567
      %v647 = vpop.f32.mrb[0].mxu0
      %v648 = vadd.f32 %v552, %v647
      %v649 = vpop.f32.mrb[0].mxu0
      %v650 = vadd.f32 %v552, %v649
      %651 = vmatprep.mubr.f32.mxu0 0.0
      %652 = vmatmul.mubr.f32.gmra.mrb[0].mxu0 %v570
      %v653 = vpop.f32.mrb[0].mxu0
      %v654 = vadd.f32 %v556, %v653
      %v655 = vpop.f32.mrb[0].mxu0
      %v656 = vadd.f32 %v556, %v655
      %657 = vmatprep.mubr.f32.mxu0 0.0
      %658 = vmatmul.mubr.f32.gmra.mrb[0].mxu0 %v573
      %v659 = vpop.f32.mrb[0].mxu0
      %v660 = vadd.f32 %v560, %v659
      %v661 = vpop.f32.mrb[0].mxu0
      %v662 = vadd.f32 %v560, %v661
      %663 = vdwg.mxu0
      %664 = vmatprep.subr.mxu0 %v517
      %665 = vmatpush1.msra.mxu0 %v516
      %666 = vmatprep.subr.mxu0 %v525
      %667 = vmatpush1.msra.mxu0 %v524
      %668 = vmatprep.subr.mxu0 %v533
      %669 = vmatpush1.msra.mxu0 %v532
      %670 = vmatprep.subr.mxu0 %v541
      %671 = vmatpush1.msra.mxu0 %v540
      %672 = vmatprep.subr.mxu0 0.0
      %673 = vmatpush1.msra.mxu0 0.0
      %674 = vmatprep.subr.mxu0 0.0
      %675 = vmatpush1.msra.mxu0 0.0
      %676 = vmatprep.subr.mxu0 0.0
      %677 = vmatpush1.msra.mxu0 0.0
      %678 = vmatprep.subr.mxu0 0.0
      %679 = vmatpush1.msra.mxu0 0.0
      %680 = vmatprep.subr.mxu0 0.0
      %681 = vmatpush1.msra.mxu0 0.0
      %682 = vmatprep.subr.mxu0 0.0
      %683 = vmatpush1.msra.mxu0 0.0
      %684 = vmatprep.subr.mxu0 0.0
      %685 = vmatpush1.msra.mxu0 0.0
      %686 = vmatprep.subr.mxu0 0.0
      %687 = vmatpush1.msra.mxu0 0.0
      %688 = vmatprep.subr.mxu0 0.0
      %689 = vmatpush1.msra.mxu0 0.0
      %690 = vmatprep.subr.mxu0 0.0
      %691 = vmatpush1.msra.mxu0 0.0
      %692 = vmatprep.subr.mxu0 0.0
      %693 = vmatpush1.msra.mxu0 0.0
      %694 = vmatprep.subr.mxu0 0.0
      %695 = vmatpush1.msra.mxu0 0.0
      %696 = vmatprep.subr.mxu0 0.0
      %697 = vmatpush1.msra.mxu0 0.0
      %698 = vmatprep.subr.mxu0 0.0
      %699 = vmatpush1.msra.mxu0 0.0
      %700 = vmatprep.subr.mxu0 0.0
      %701 = vmatpush1.msra.mxu0 0.0
      %702 = vmatprep.subr.mxu0 0.0
      %703 = vmatpush1.msra.mxu0 0.0
      %704 = vmatprep.subr.mxu0 0.0
      %705 = vmatpush1.msra.mxu0 0.0
      %706 = vmatprep.subr.mxu0 0.0
      %707 = vmatpush1.msra.mxu0 0.0
      %708 = vmatprep.subr.mxu0 0.0
      %709 = vmatpush1.msra.mxu0 0.0
      %710 = vmatprep.subr.mxu0 0.0
      %711 = vmatpush1.msra.mxu0 0.0
      %712 = vmatprep.subr.mxu0 0.0
      %713 = vmatpush1.msra.mxu0 0.0
      %714 = vmatprep.subr.mxu0 0.0
      %715 = vmatpush1.msra.mxu0 0.0
      %716 = vmatprep.subr.mxu0 0.0
      %717 = vmatpush1.msra.mxu0 0.0
      %718 = vmatprep.subr.mxu0 0.0
      %719 = vmatpush1.msra.mxu0 0.0
      %720 = vmatprep.subr.mxu0 0.0
      %721 = vmatpush1.msra.mxu0 0.0
      %722 = vmatprep.subr.mxu0 0.0
      %723 = vmatpush1.msra.mxu0 0.0
      %724 = vmatprep.subr.mxu0 0.0
      %725 = vmatpush1.msra.mxu0 0.0
      %726 = vmatprep.subr.mxu0 0.0
      %727 = vmatpush1.msra.mxu0 0.0
      %728 = vmatprep.mubr.f32.mxu0 0.0
      %729 = vmatmul.mubr.f32.gmra.mrb[0].mxu0 %v564
      %v730 = vpop.f32.mrb[0].mxu0
      %v731 = vadd.f32 %v548, %v730
      %v732 = vpop.f32.mrb[0].mxu0
      %v733 = vadd.f32 %v548, %v732
      %734 = vmatprep.mubr.f32.mxu0 0.0
      %735 = vmatmul.mubr.f32.gmra.mrb[0].mxu0 %v567
      %v736 = vpop.f32.mrb[0].mxu0
      %v737 = vadd.f32 %v552, %v736
      %v738 = vpop.f32.mrb[0].mxu0
      %v739 = vadd.f32 %v552, %v738
      %740 = vmatprep.mubr.f32.mxu0 0.0
      %741 = vmatmul.mubr.f32.gmra.mrb[0].mxu0 %v570
      %v742 = vpop.f32.mrb[0].mxu0
      %v743 = vadd.f32 %v556, %v742
      %v744 = vpop.f32.mrb[0].mxu0
      %v745 = vadd.f32 %v556, %v744
      %746 = vmatprep.mubr.f32.mxu0 0.0
      %747 = vmatmul.mubr.f32.gmra.mrb[0].mxu0 %v573
      %v748 = vpop.f32.mrb[0].mxu0
      %v749 = vadd.f32 %v560, %v748
      %v750 = vpop.f32.mrb[0].mxu0
      %v751 = vadd.f32 %v560, %v750
      %752 = vdwg.mxu0
      %753 = vmatprep.subr.mxu0 %v519
      %754 = vmatpush1.msra.mxu0 %v518
      %755 = vmatprep.subr.mxu0 %v527
      %756 = vmatpush1.msra.mxu0 %v526
      %757 = vmatprep.subr.mxu0 %v535
      %758 = vmatpush1.msra.mxu0 %v534
      %759 = vmatprep.subr.mxu0 %v543
      %760 = vmatpush1.msra.mxu0 %v542
      %761 = vmatprep.subr.mxu0 0.0
      %762 = vmatpush1.msra.mxu0 0.0
      %763 = vmatprep.subr.mxu0 0.0
      %764 = vmatpush1.msra.mxu0 0.0
      %765 = vmatprep.subr.mxu0 0.0
      %766 = vmatpush1.msra.mxu0 0.0
      %767 = vmatprep.subr.mxu0 0.0
      %768 = vmatpush1.msra.mxu0 0.0
      %769 = vmatprep.subr.mxu0 0.0
      %770 = vmatpush1.msra.mxu0 0.0
      %771 = vmatprep.subr.mxu0 0.0
      %772 = vmatpush1.msra.mxu0 0.0
      %773 = vmatprep.subr.mxu0 0.0
      %774 = vmatpush1.msra.mxu0 0.0
      %775 = vmatprep.subr.mxu0 0.0
      %776 = vmatpush1.msra.mxu0 0.0
      %777 = vmatprep.subr.mxu0 0.0
      %778 = vmatpush1.msra.mxu0 0.0
      %779 = vmatprep.subr.mxu0 0.0
      %780 = vmatpush1.msra.mxu0 0.0
      %781 = vmatprep.subr.mxu0 0.0
      %782 = vmatpush1.msra.mxu0 0.0
      %783 = vmatprep.subr.mxu0 0.0
      %784 = vmatpush1.msra.mxu0 0.0
      %785 = vmatprep.subr.mxu0 0.0
      %786 = vmatpush1.msra.mxu0 0.0
      %787 = vmatprep.subr.mxu0 0.0
      %788 = vmatpush1.msra.mxu0 0.0
      %789 = vmatprep.subr.mxu0 0.0
      %790 = vmatpush1.msra.mxu0 0.0
      %791 = vmatprep.subr.mxu0 0.0
      %792 = vmatpush1.msra.mxu0 0.0
      %793 = vmatprep.subr.mxu0 0.0
      %794 = vmatpush1.msra.mxu0 0.0
      %795 = vmatprep.subr.mxu0 0.0
      %796 = vmatpush1.msra.mxu0 0.0
      %797 = vmatprep.subr.mxu0 0.0
      %798 = vmatpush1.msra.mxu0 0.0
      %799 = vmatprep.subr.mxu0 0.0
      %800 = vmatpush1.msra.mxu0 0.0
      %801 = vmatprep.subr.mxu0 0.0
      %802 = vmatpush1.msra.mxu0 0.0
      %803 = vmatprep.subr.mxu0 0.0
      %804 = vmatpush1.msra.mxu0 0.0
      %805 = vmatprep.subr.mxu0 0.0
      %806 = vmatpush1.msra.mxu0 0.0
      %807 = vmatprep.subr.mxu0 0.0
      %808 = vmatpush1.msra.mxu0 0.0
      %809 = vmatprep.subr.mxu0 0.0
      %810 = vmatpush1.msra.mxu0 0.0
      %811 = vmatprep.subr.mxu0 0.0
      %812 = vmatpush1.msra.mxu0 0.0
      %813 = vmatprep.subr.mxu0 0.0
      %814 = vmatpush1.msra.mxu0 0.0
      %815 = vmatprep.subr.mxu0 0.0
      %816 = vmatpush1.msra.mxu0 0.0
      %817 = vmatprep.mubr.f32.mxu0 0.0
      %818 = vmatmul.mubr.f32.gmra.mrb[0].mxu0 %v564
      %v819 = vpop.f32.mrb[0].mxu0
      %v820 = vadd.f32 %v548, %v819
      %v821 = vpop.f32.mrb[0].mxu0
      %v822 = vadd.f32 %v548, %v821
      %823 = vmatprep.mubr.f32.mxu0 0.0
      %824 = vmatmul.mubr.f32.gmra.mrb[0].mxu0 %v567
      %v825 = vpop.f32.mrb[0].mxu0
      %v826 = vadd.f32 %v552, %v825
      %v827 = vpop.f32.mrb[0].mxu0
      %v828 = vadd.f32 %v552, %v827
      %829 = vmatprep.mubr.f32.mxu0 0.0
      %830 = vmatmul.mubr.f32.gmra.mrb[0].mxu0 %v570
      %v831 = vpop.f32.mrb[0].mxu0
      %v832 = vadd.f32 %v556, %v831
      %v833 = vpop.f32.mrb[0].mxu0
      %v834 = vadd.f32 %v556, %v833
      %835 = vmatprep.mubr.f32.mxu0 0.0
      %836 = vmatmul.mubr.f32.gmra.mrb[0].mxu0 %v573
      %v837 = vpop.f32.mrb[0].mxu0
      %v838 = vadd.f32 %v560, %v837
      %v839 = vpop.f32.mrb[0].mxu0
      %v840 = vadd.f32 %v560, %v839
      %841 = vdwg.mxu0
      %842 = vmatprep.subr.mxu0 %v521
      %843 = vmatpush1.msra.mxu0 %v520
      %844 = vmatprep.subr.mxu0 %v529
      %845 = vmatpush1.msra.mxu0 %v528
      %846 = vmatprep.subr.mxu0 %v537
      %847 = vmatpush1.msra.mxu0 %v536
      %848 = vmatprep.subr.mxu0 %v545
      %849 = vmatpush1.msra.mxu0 %v544
      %850 = vmatprep.subr.mxu0 0.0
      %851 = vmatpush1.msra.mxu0 0.0
      %852 = vmatprep.subr.mxu0 0.0
      %853 = vmatpush1.msra.mxu0 0.0
      %854 = vmatprep.subr.mxu0 0.0
      %855 = vmatpush1.msra.mxu0 0.0
      %856 = vmatprep.subr.mxu0 0.0
      %857 = vmatpush1.msra.mxu0 0.0
      %858 = vmatprep.subr.mxu0 0.0
      %859 = vmatpush1.msra.mxu0 0.0
      %860 = vmatprep.subr.mxu0 0.0
      %861 = vmatpush1.msra.mxu0 0.0
      %862 = vmatprep.subr.mxu0 0.0
      %863 = vmatpush1.msra.mxu0 0.0
      %864 = vmatprep.subr.mxu0 0.0
      %865 = vmatpush1.msra.mxu0 0.0
      %866 = vmatprep.subr.mxu0 0.0
      %867 = vmatpush1.msra.mxu0 0.0
      %868 = vmatprep.subr.mxu0 0.0
      %869 = vmatpush1.msra.mxu0 0.0
      %870 = vmatprep.subr.mxu0 0.0
      %871 = vmatpush1.msra.mxu0 0.0
      %872 = vmatprep.subr.mxu0 0.0
      %873 = vmatpush1.msra.mxu0 0.0
      %874 = vmatprep.subr.mxu0 0.0
      %875 = vmatpush1.msra.mxu0 0.0
      %876 = vmatprep.subr.mxu0 0.0
      %877 = vmatpush1.msra.mxu0 0.0
      %878 = vmatprep.subr.mxu0 0.0
      %879 = vmatpush1.msra.mxu0 0.0
      %880 = vmatprep.subr.mxu0 0.0
      %881 = vmatpush1.msra.mxu0 0.0
      %882 = vmatprep.subr.mxu0 0.0
      %883 = vmatpush1.msra.mxu0 0.0
      %884 = vmatprep.subr.mxu0 0.0
      %885 = vmatpush1.msra.mxu0 0.0
      %886 = vmatprep.subr.mxu0 0.0
      %887 = vmatpush1.msra.mxu0 0.0
      %888 = vmatprep.subr.mxu0 0.0
      %889 = vmatpush1.msra.mxu0 0.0
      %890 = vmatprep.subr.mxu0 0.0
      %891 = vmatpush1.msra.mxu0 0.0
      %892 = vmatprep.subr.mxu0 0.0
      %893 = vmatpush1.msra.mxu0 0.0
      %894 = vmatprep.subr.mxu0 0.0
      %895 = vmatpush1.msra.mxu0 0.0
      %896 = vmatprep.subr.mxu0 0.0
      %897 = vmatpush1.msra.mxu0 0.0
      %898 = vmatprep.subr.mxu0 0.0
      %899 = vmatpush1.msra.mxu0 0.0
      %900 = vmatprep.subr.mxu0 0.0
      %901 = vmatpush1.msra.mxu0 0.0
      %902 = vmatprep.subr.mxu0 0.0
      %903 = vmatpush1.msra.mxu0 0.0
      %904 = vmatprep.subr.mxu0 0.0
      %905 = vmatpush1.msra.mxu0 0.0
      %906 = vmatprep.mubr.f32.mxu0 0.0
      %907 = vmatmul.mubr.f32.gmra.mrb[0].mxu0 %v564
      %v908 = vpop.f32.mrb[0].mxu0
      %v909 = vadd.f32 %v548, %v908
      %v910 = vpop.f32.mrb[0].mxu0
      %v911 = vadd.f32 %v548, %v910
      %912 = vmatprep.mubr.f32.mxu0 0.0
      %913 = vmatmul.mubr.f32.gmra.mrb[0].mxu0 %v567
      %v914 = vpop.f32.mrb[0].mxu0
      %v915 = vadd.f32 %v552, %v914
      %v916 = vpop.f32.mrb[0].mxu0
      %v917 = vadd.f32 %v552, %v916
      %918 = vmatprep.mubr.f32.mxu0 0.0
      %919 = vmatmul.mubr.f32.gmra.mrb[0].mxu0 %v570
      %v920 = vpop.f32.mrb[0].mxu0
      %v921 = vadd.f32 %v556, %v920
      %v922 = vpop.f32.mrb[0].mxu0
      %v923 = vadd.f32 %v556, %v922
      %924 = vmatprep.mubr.f32.mxu0 0.0
      %925 = vmatmul.mubr.f32.gmra.mrb[0].mxu0 %v573
      %v926 = vpop.f32.mrb[0].mxu0
      %v927 = vadd.f32 %v560, %v926
      %v928 = vpop.f32.mrb[0].mxu0
      %v929 = vadd.f32 %v560, %v928
      %930 = vdwg.mxu0
      %v931 = vtanh.pop %v642
      %v932 = vtanh.pop %v644
      %v933 = vtanh.pop %v731
      %v934 = vtanh.pop %v733
      %v935 = vtanh.pop %v820
      %v936 = vtanh.pop %v822
      %v937 = vtanh.pop %v909
      %v938 = vtanh.pop %v911
      %v939 = vtanh.pop %v648
      %v940 = vtanh.pop %v650
      %v941 = vtanh.pop %v737
      %v942 = vtanh.pop %v739
      %v943 = vtanh.pop %v826
      %v944 = vtanh.pop %v828
      %v945 = vtanh.pop %v915
      %v946 = vtanh.pop %v917
      %v947 = vtanh.pop %v654
      %v948 = vtanh.pop %v656
      %v949 = vtanh.pop %v743
      %v950 = vtanh.pop %v745
      %v951 = vtanh.pop %v832
      %v952 = vtanh.pop %v834
      %v953 = vtanh.pop %v921
      %v954 = vtanh.pop %v923
      %v955 = vtanh.pop %v660
      %v956 = vtanh.pop %v662
      %v957 = vtanh.pop %v749
      %v958 = vtanh.pop %v751
      %v959 = vtanh.pop %v838
      %v960 = vtanh.pop %v840
      %v961 = vtanh.pop %v927
      %v962 = vtanh.pop %v929
      %963 = vset.pattern.permute.xlu0 4
      %964 = vperm.xlu0 %963, %v176
      %v965 = vpop.permute.xlu0 %964
      %967 = vset.pattern.permute.xlu0 4
      %968 = vperm.xlu0 %967, %v177
      %v969 = vpop.permute.xlu0 %968
      %971 = vset.pattern.permute.xlu0 4
      %972 = vperm.xlu0 %971, %v178
      %v973 = vpop.permute.xlu0 %972
      %975 = vset.pattern.permute.xlu0 4
      %976 = vperm.xlu0 %975, %v179
      %v977 = vpop.permute.xlu0 %976
      %v979 = vmul.f32 %v965, %v931
      %v980 = vmul.f32 %v965, %v932
      %v981 = vmul.f32 %v965, %v933
      %v982 = vmul.f32 %v965, %v934
      %v983 = vmul.f32 %v965, %v935
      %v984 = vmul.f32 %v965, %v936
      %v985 = vmul.f32 %v965, %v937
      %v986 = vmul.f32 %v965, %v938
      %v987 = vmul.f32 %v969, %v939
      %v988 = vmul.f32 %v969, %v940
      %v989 = vmul.f32 %v969, %v941
      %v990 = vmul.f32 %v969, %v942
      %v991 = vmul.f32 %v969, %v943
      %v992 = vmul.f32 %v969, %v944
      %v993 = vmul.f32 %v969, %v945
      %v994 = vmul.f32 %v969, %v946
      %v995 = vmul.f32 %v973, %v947
      %v996 = vmul.f32 %v973, %v948
      %v997 = vmul.f32 %v973, %v949
      %v998 = vmul.f32 %v973, %v950
      %v999 = vmul.f32 %v973, %v951
      %v1000 = vmul.f32 %v973, %v952
      %v1001 = vmul.f32 %v973, %v953
      %v1002 = vmul.f32 %v973, %v954
      %v1003 = vmul.f32 %v977, %v955
      %v1004 = vmul.f32 %v977, %v956
      %v1005 = vmul.f32 %v977, %v957
      %v1006 = vmul.f32 %v977, %v958
      %v1007 = vmul.f32 %v977, %v959
      %v1008 = vmul.f32 %v977, %v960
      %v1009 = vmul.f32 %v977, %v961
      %v1010 = vmul.f32 %v977, %v962
      %v1011 = vadd.f32 %v979, %v987
      %v1012 = vadd.f32 %v1011, %v995
      %v1013 = vadd.f32 %v1012, %v1003
      %v1014 = vrot.slane %v1013, 4
      %v1015 = vadd.f32 %v1013, %v1014
      %v1016 = vrot.slane %v1015, 2
      %v1017 = vadd.f32 %v1015, %v1016
      %v1018 = vrot.slane %v1017, 1
      %v1019 = vadd.f32 %v1017, %v1018
      %v1020 = vadd.f32 %v980, %v988
      %v1021 = vadd.f32 %v1020, %v996
      %v1022 = vadd.f32 %v1021, %v1004
      %v1023 = vrot.slane %v1022, 4
      %v1024 = vadd.f32 %v1022, %v1023
      %v1025 = vrot.slane %v1024, 2
      %v1026 = vadd.f32 %v1024, %v1025
      %v1027 = vrot.slane %v1026, 1
      %v1028 = vadd.f32 %v1026, %v1027
      %v1029 = vadd.f32 %v981, %v989
      %v1030 = vadd.f32 %v1029, %v997
      %v1031 = vadd.f32 %v1030, %v1005
      %v1032 = vrot.slane %v1031, 4
      %v1033 = vadd.f32 %v1031, %v1032
      %v1034 = vrot.slane %v1033, 2
      %v1035 = vadd.f32 %v1033, %v1034
      %v1036 = vrot.slane %v1035, 1
      %v1037 = vadd.f32 %v1035, %v1036
      %v1038 = vadd.f32 %v982, %v990
      %v1039 = vadd.f32 %v1038, %v998
      %v1040 = vadd.f32 %v1039, %v1006
      %v1041 = vrot.slane %v1040, 4
      %v1042 = vadd.f32 %v1040, %v1041
      %v1043 = vrot.slane %v1042, 2
      %v1044 = vadd.f32 %v1042, %v1043
      %v1045 = vrot.slane %v1044, 1
      %v1046 = vadd.f32 %v1044, %v1045
      %v1047 = vadd.f32 %v983, %v991
      %v1048 = vadd.f32 %v1047, %v999
      %v1049 = vadd.f32 %v1048, %v1007
      %v1050 = vrot.slane %v1049, 4
      %v1051 = vadd.f32 %v1049, %v1050
      %v1052 = vrot.slane %v1051, 2
      %v1053 = vadd.f32 %v1051, %v1052
      %v1054 = vrot.slane %v1053, 1
      %v1055 = vadd.f32 %v1053, %v1054
      %v1056 = vadd.f32 %v984, %v992
      %v1057 = vadd.f32 %v1056, %v1000
      %v1058 = vadd.f32 %v1057, %v1008
      %v1059 = vrot.slane %v1058, 4
      %v1060 = vadd.f32 %v1058, %v1059
      %v1061 = vrot.slane %v1060, 2
      %v1062 = vadd.f32 %v1060, %v1061
      %v1063 = vrot.slane %v1062, 1
      %v1064 = vadd.f32 %v1062, %v1063
      %v1065 = vadd.f32 %v985, %v993
      %v1066 = vadd.f32 %v1065, %v1001
      %v1067 = vadd.f32 %v1066, %v1009
      %v1068 = vrot.slane %v1067, 4
      %v1069 = vadd.f32 %v1067, %v1068
      %v1070 = vrot.slane %v1069, 2
      %v1071 = vadd.f32 %v1069, %v1070
      %v1072 = vrot.slane %v1071, 1
      %v1073 = vadd.f32 %v1071, %v1072
      %v1074 = vadd.f32 %v986, %v994
      %v1075 = vadd.f32 %v1074, %v1002
      %v1076 = vadd.f32 %v1075, %v1010
      %v1077 = vrot.slane %v1076, 4
      %v1078 = vadd.f32 %v1076, %v1077
      %v1079 = vrot.slane %v1078, 2
      %v1080 = vadd.f32 %v1078, %v1079
      %v1081 = vrot.slane %v1080, 1
      %v1082 = vadd.f32 %v1080, %v1081
      %1083 = vset.pattern.permute.xlu0 5
      %1084 = vperm.xlu0 %1083, %v176
      %v1085 = vpop.permute.xlu0 %1084
      %v1087 = vadd.f32 %v1019, %v1085
      %v1088 = vadd.f32 %v1028, %v1085
      %v1089 = vadd.f32 %v1037, %v1085
      %v1090 = vadd.f32 %v1046, %v1085
      %v1091 = vadd.f32 %v1055, %v1085
      %v1092 = vadd.f32 %v1064, %v1085
      %v1093 = vadd.f32 %v1073, %v1085
      %v1094 = vadd.f32 %v1082, %v1085
      %v1095 = vmul.f32 %v931, %v931
      %v1096 = vmul.f32 %v932, %v932
      %v1097 = vmul.f32 %v933, %v933
      %v1098 = vmul.f32 %v934, %v934
      %v1099 = vmul.f32 %v935, %v935
      %v1100 = vmul.f32 %v936, %v936
      %v1101 = vmul.f32 %v937, %v937
      %v1102 = vmul.f32 %v938, %v938
      %v1103 = vmul.f32 %v939, %v939
      %v1104 = vmul.f32 %v940, %v940
      %v1105 = vmul.f32 %v941, %v941
      %v1106 = vmul.f32 %v942, %v942
      %v1107 = vmul.f32 %v943, %v943
      %v1108 = vmul.f32 %v944, %v944
      %v1109 = vmul.f32 %v945, %v945
      %v1110 = vmul.f32 %v946, %v946
      %v1111 = vmul.f32 %v947, %v947
      %v1112 = vmul.f32 %v948, %v948
      %v1113 = vmul.f32 %v949, %v949
      %v1114 = vmul.f32 %v950, %v950
      %v1115 = vmul.f32 %v951, %v951
      %v1116 = vmul.f32 %v952, %v952
      %v1117 = vmul.f32 %v953, %v953
      %v1118 = vmul.f32 %v954, %v954
      %v1119 = vmul.f32 %v955, %v955
      %v1120 = vmul.f32 %v956, %v956
      %v1121 = vmul.f32 %v957, %v957
      %v1122 = vmul.f32 %v958, %v958
      %v1123 = vmul.f32 %v959, %v959
      %v1124 = vmul.f32 %v960, %v960
      %v1125 = vmul.f32 %v961, %v961
      %v1126 = vmul.f32 %v962, %v962
      %v1127 = vsub.f32 1.0, %v1095
      %v1128 = vsub.f32 1.0, %v1096
      %v1129 = vsub.f32 1.0, %v1097
      %v1130 = vsub.f32 1.0, %v1098
      %v1131 = vsub.f32 1.0, %v1099
      %v1132 = vsub.f32 1.0, %v1100
      %v1133 = vsub.f32 1.0, %v1101
      %v1134 = vsub.f32 1.0, %v1102
      %v1135 = vsub.f32 1.0, %v1103
      %v1136 = vsub.f32 1.0, %v1104
      %v1137 = vsub.f32 1.0, %v1105
      %v1138 = vsub.f32 1.0, %v1106
      %v1139 = vsub.f32 1.0, %v1107
      %v1140 = vsub.f32 1.0, %v1108
      %v1141 = vsub.f32 1.0, %v1109
      %v1142 = vsub.f32 1.0, %v1110
      %v1143 = vsub.f32 1.0, %v1111
      %v1144 = vsub.f32 1.0, %v1112
      %v1145 = vsub.f32 1.0, %v1113
      %v1146 = vsub.f32 1.0, %v1114
      %v1147 = vsub.f32 1.0, %v1115
      %v1148 = vsub.f32 1.0, %v1116
      %v1149 = vsub.f32 1.0, %v1117
      %v1150 = vsub.f32 1.0, %v1118
      %v1151 = vsub.f32 1.0, %v1119
      %v1152 = vsub.f32 1.0, %v1120
      %v1153 = vsub.f32 1.0, %v1121
      %v1154 = vsub.f32 1.0, %v1122
      %v1155 = vsub.f32 1.0, %v1123
      %v1156 = vsub.f32 1.0, %v1124
      %v1157 = vsub.f32 1.0, %v1125
      %v1158 = vsub.f32 1.0, %v1126
      %v1159 = vmul.f32 %v1127, %v965
      %v1160 = vmul.f32 %v1128, %v965
      %v1161 = vmul.f32 %v1129, %v965
      %v1162 = vmul.f32 %v1130, %v965
      %v1163 = vmul.f32 %v1131, %v965
      %v1164 = vmul.f32 %v1132, %v965
      %v1165 = vmul.f32 %v1133, %v965
      %v1166 = vmul.f32 %v1134, %v965
      %v1167 = vmul.f32 %v1135, %v969
      %v1168 = vmul.f32 %v1136, %v969
      %v1169 = vmul.f32 %v1137, %v969
      %v1170 = vmul.f32 %v1138, %v969
      %v1171 = vmul.f32 %v1139, %v969
      %v1172 = vmul.f32 %v1140, %v969
      %v1173 = vmul.f32 %v1141, %v969
      %v1174 = vmul.f32 %v1142, %v969
      %v1175 = vmul.f32 %v1143, %v973
      %v1176 = vmul.f32 %v1144, %v973
      %v1177 = vmul.f32 %v1145, %v973
      %v1178 = vmul.f32 %v1146, %v973
      %v1179 = vmul.f32 %v1147, %v973
      %v1180 = vmul.f32 %v1148, %v973
      %v1181 = vmul.f32 %v1149, %v973
      %v1182 = vmul.f32 %v1150, %v973
      %v1183 = vmul.f32 %v1151, %v977
      %v1184 = vmul.f32 %v1152, %v977
      %v1185 = vmul.f32 %v1153, %v977
      %v1186 = vmul.f32 %v1154, %v977
      %v1187 = vmul.f32 %v1155, %v977
      %v1188 = vmul.f32 %v1156, %v977
      %v1189 = vmul.f32 %v1157, %v977
      %v1190 = vmul.f32 %v1158, %v977
      %v1192 = vsel %vm562, %v184, 0
      %v1195 = vsel %vm562, %v185, 0
      %v1198 = vsel %vm562, %v186, 0
      %v1201 = vsel %vm562, %v187, 0
      %1203 = vmatprep.subr.mxu0 %v1160
      %1204 = vmatpush1.msra.mxu0 %v1159
      %1205 = vmatprep.subr.mxu0 %v1168
      %1206 = vmatpush1.msra.mxu0 %v1167
      %1207 = vmatprep.subr.mxu0 %v1176
      %1208 = vmatpush1.msra.mxu0 %v1175
      %1209 = vmatprep.subr.mxu0 %v1184
      %1210 = vmatpush1.msra.mxu0 %v1183
      %1211 = vmatprep.subr.mxu0 0.0
      %1212 = vmatpush1.msra.mxu0 0.0
      %1213 = vmatprep.subr.mxu0 0.0
      %1214 = vmatpush1.msra.mxu0 0.0
      %1215 = vmatprep.subr.mxu0 0.0
      %1216 = vmatpush1.msra.mxu0 0.0
      %1217 = vmatprep.subr.mxu0 0.0
      %1218 = vmatpush1.msra.mxu0 0.0
      %1219 = vmatprep.subr.mxu0 0.0
      %1220 = vmatpush1.msra.mxu0 0.0
      %1221 = vmatprep.subr.mxu0 0.0
      %1222 = vmatpush1.msra.mxu0 0.0
      %1223 = vmatprep.subr.mxu0 0.0
      %1224 = vmatpush1.msra.mxu0 0.0
      %1225 = vmatprep.subr.mxu0 0.0
      %1226 = vmatpush1.msra.mxu0 0.0
      %1227 = vmatprep.subr.mxu0 0.0
      %1228 = vmatpush1.msra.mxu0 0.0
      %1229 = vmatprep.subr.mxu0 0.0
      %1230 = vmatpush1.msra.mxu0 0.0
      %1231 = vmatprep.subr.mxu0 0.0
      %1232 = vmatpush1.msra.mxu0 0.0
      %1233 = vmatprep.subr.mxu0 0.0
      %1234 = vmatpush1.msra.mxu0 0.0
      %1235 = vmatprep.subr.mxu0 0.0
      %1236 = vmatpush1.msra.mxu0 0.0
      %1237 = vmatprep.subr.mxu0 0.0
      %1238 = vmatpush1.msra.mxu0 0.0
      %1239 = vmatprep.subr.mxu0 0.0
      %1240 = vmatpush1.msra.mxu0 0.0
      %1241 = vmatprep.subr.mxu0 0.0
      %1242 = vmatpush1.msra.mxu0 0.0
      %1243 = vmatprep.subr.mxu0 0.0
      %1244 = vmatpush1.msra.mxu0 0.0
      %1245 = vmatprep.subr.mxu0 0.0
      %1246 = vmatpush1.msra.mxu0 0.0
      %1247 = vmatprep.subr.mxu0 0.0
      %1248 = vmatpush1.msra.mxu0 0.0
      %1249 = vmatprep.subr.mxu0 0.0
      %1250 = vmatpush1.msra.mxu0 0.0
      %1251 = vmatprep.subr.mxu0 0.0
      %1252 = vmatpush1.msra.mxu0 0.0
      %1253 = vmatprep.subr.mxu0 0.0
      %1254 = vmatpush1.msra.mxu0 0.0
      %1255 = vmatprep.subr.mxu0 0.0
      %1256 = vmatpush1.msra.mxu0 0.0
      %1257 = vmatprep.subr.mxu0 0.0
      %1258 = vmatpush1.msra.mxu0 0.0
      %1259 = vmatprep.subr.mxu0 0.0
      %1260 = vmatpush1.msra.mxu0 0.0
      %1261 = vmatprep.subr.mxu0 0.0
      %1262 = vmatpush1.msra.mxu0 0.0
      %1263 = vmatprep.subr.mxu0 0.0
      %1264 = vmatpush1.msra.mxu0 0.0
      %1265 = vmatprep.subr.mxu0 0.0
      %1266 = vmatpush1.msra.mxu0 0.0
      %1267 = vmatprep.mubr.f32.mxu0 0.0
      %1268 = vmatmul.mubr.f32.gmra.mrb[0].mxu0 %v1192
      %v1269 = vpop.f32.mrb[0].mxu0
      %v1270 = vadd.f32 0.0, %v1269
      %v1271 = vpop.f32.mrb[0].mxu0
      %v1272 = vadd.f32 0.0, %v1271
      %1273 = vmatprep.mubr.f32.mxu0 0.0
      %1274 = vmatmul.mubr.f32.gmra.mrb[0].mxu0 %v1195
      %v1275 = vpop.f32.mrb[0].mxu0
      %v1276 = vadd.f32 0.0, %v1275
      %v1277 = vpop.f32.mrb[0].mxu0
      %v1278 = vadd.f32 0.0, %v1277
      %1279 = vmatprep.mubr.f32.mxu0 0.0
      %1280 = vmatmul.mubr.f32.gmra.mrb[0].mxu0 %v1198
      %v1281 = vpop.f32.mrb[0].mxu0
      %v1282 = vadd.f32 0.0, %v1281
      %v1283 = vpop.f32.mrb[0].mxu0
      %v1284 = vadd.f32 0.0, %v1283
      %1285 = vmatprep.mubr.f32.mxu0 0.0
      %1286 = vmatmul.mubr.f32.gmra.mrb[0].mxu0 %v1201
      %v1287 = vpop.f32.mrb[0].mxu0
      %v1288 = vadd.f32 0.0, %v1287
      %v1289 = vpop.f32.mrb[0].mxu0
      %v1290 = vadd.f32 0.0, %v1289
      %1291 = vdwg.mxu0
      %1292 = vmatprep.subr.mxu0 %v1162
      %1293 = vmatpush1.msra.mxu0 %v1161
      %1294 = vmatprep.subr.mxu0 %v1170
      %1295 = vmatpush1.msra.mxu0 %v1169
      %1296 = vmatprep.subr.mxu0 %v1178
      %1297 = vmatpush1.msra.mxu0 %v1177
      %1298 = vmatprep.subr.mxu0 %v1186
      %1299 = vmatpush1.msra.mxu0 %v1185
      %1300 = vmatprep.subr.mxu0 0.0
      %1301 = vmatpush1.msra.mxu0 0.0
      %1302 = vmatprep.subr.mxu0 0.0
      %1303 = vmatpush1.msra.mxu0 0.0
      %1304 = vmatprep.subr.mxu0 0.0
      %1305 = vmatpush1.msra.mxu0 0.0
      %1306 = vmatprep.subr.mxu0 0.0
      %1307 = vmatpush1.msra.mxu0 0.0
      %1308 = vmatprep.subr.mxu0 0.0
      %1309 = vmatpush1.msra.mxu0 0.0
      %1310 = vmatprep.subr.mxu0 0.0
      %1311 = vmatpush1.msra.mxu0 0.0
      %1312 = vmatprep.subr.mxu0 0.0
      %1313 = vmatpush1.msra.mxu0 0.0
      %1314 = vmatprep.subr.mxu0 0.0
      %1315 = vmatpush1.msra.mxu0 0.0
      %1316 = vmatprep.subr.mxu0 0.0
      %1317 = vmatpush1.msra.mxu0 0.0
      %1318 = vmatprep.subr.mxu0 0.0
      %1319 = vmatpush1.msra.mxu0 0.0
      %1320 = vmatprep.subr.mxu0 0.0
      %1321 = vmatpush1.msra.mxu0 0.0
      %1322 = vmatprep.subr.mxu0 0.0
      %1323 = vmatpush1.msra.mxu0 0.0
      %1324 = vmatprep.subr.mxu0 0.0
      %1325 = vmatpush1.msra.mxu0 0.0
      %1326 = vmatprep.subr.mxu0 0.0
      %1327 = vmatpush1.msra.mxu0 0.0
      %1328 = vmatprep.subr.mxu0 0.0
      %1329 = vmatpush1.msra.mxu0 0.0
      %1330 = vmatprep.subr.mxu0 0.0
      %1331 = vmatpush1.msra.mxu0 0.0
      %1332 = vmatprep.subr.mxu0 0.0
      %1333 = vmatpush1.msra.mxu0 0.0
      %1334 = vmatprep.subr.mxu0 0.0
      %1335 = vmatpush1.msra.mxu0 0.0
      %1336 = vmatprep.subr.mxu0 0.0
      %1337 = vmatpush1.msra.mxu0 0.0
      %1338 = vmatprep.subr.mxu0 0.0
      %1339 = vmatpush1.msra.mxu0 0.0
      %1340 = vmatprep.subr.mxu0 0.0
      %1341 = vmatpush1.msra.mxu0 0.0
      %1342 = vmatprep.subr.mxu0 0.0
      %1343 = vmatpush1.msra.mxu0 0.0
      %1344 = vmatprep.subr.mxu0 0.0
      %1345 = vmatpush1.msra.mxu0 0.0
      %1346 = vmatprep.subr.mxu0 0.0
      %1347 = vmatpush1.msra.mxu0 0.0
      %1348 = vmatprep.subr.mxu0 0.0
      %1349 = vmatpush1.msra.mxu0 0.0
      %1350 = vmatprep.subr.mxu0 0.0
      %1351 = vmatpush1.msra.mxu0 0.0
      %1352 = vmatprep.subr.mxu0 0.0
      %1353 = vmatpush1.msra.mxu0 0.0
      %1354 = vmatprep.subr.mxu0 0.0
      %1355 = vmatpush1.msra.mxu0 0.0
      %1356 = vmatprep.mubr.f32.mxu0 0.0
      %1357 = vmatmul.mubr.f32.gmra.mrb[0].mxu0 %v1192
      %v1358 = vpop.f32.mrb[0].mxu0
      %v1359 = vadd.f32 0.0, %v1358
      %v1360 = vpop.f32.mrb[0].mxu0
      %v1361 = vadd.f32 0.0, %v1360
      %1362 = vmatprep.mubr.f32.mxu0 0.0
      %1363 = vmatmul.mubr.f32.gmra.mrb[0].mxu0 %v1195
      %v1364 = vpop.f32.mrb[0].mxu0
      %v1365 = vadd.f32 0.0, %v1364
      %v1366 = vpop.f32.mrb[0].mxu0
      %v1367 = vadd.f32 0.0, %v1366
      %1368 = vmatprep.mubr.f32.mxu0 0.0
      %1369 = vmatmul.mubr.f32.gmra.mrb[0].mxu0 %v1198
      %v1370 = vpop.f32.mrb[0].mxu0
      %v1371 = vadd.f32 0.0, %v1370
      %v1372 = vpop.f32.mrb[0].mxu0
      %v1373 = vadd.f32 0.0, %v1372
      %1374 = vmatprep.mubr.f32.mxu0 0.0
      %1375 = vmatmul.mubr.f32.gmra.mrb[0].mxu0 %v1201
      %v1376 = vpop.f32.mrb[0].mxu0
      %v1377 = vadd.f32 0.0, %v1376
      %v1378 = vpop.f32.mrb[0].mxu0
      %v1379 = vadd.f32 0.0, %v1378
      %1380 = vdwg.mxu0
      %1381 = vmatprep.subr.mxu0 %v1164
      %1382 = vmatpush1.msra.mxu0 %v1163
      %1383 = vmatprep.subr.mxu0 %v1172
      %1384 = vmatpush1.msra.mxu0 %v1171
      %1385 = vmatprep.subr.mxu0 %v1180
      %1386 = vmatpush1.msra.mxu0 %v1179
      %1387 = vmatprep.subr.mxu0 %v1188
      %1388 = vmatpush1.msra.mxu0 %v1187
      %1389 = vmatprep.subr.mxu0 0.0
      %1390 = vmatpush1.msra.mxu0 0.0
      %1391 = vmatprep.subr.mxu0 0.0
      %1392 = vmatpush1.msra.mxu0 0.0
      %1393 = vmatprep.subr.mxu0 0.0
      %1394 = vmatpush1.msra.mxu0 0.0
      %1395 = vmatprep.subr.mxu0 0.0
      %1396 = vmatpush1.msra.mxu0 0.0
      %1397 = vmatprep.subr.mxu0 0.0
      %1398 = vmatpush1.msra.mxu0 0.0
      %1399 = vmatprep.subr.mxu0 0.0
      %1400 = vmatpush1.msra.mxu0 0.0
      %1401 = vmatprep.subr.mxu0 0.0
      %1402 = vmatpush1.msra.mxu0 0.0
      %1403 = vmatprep.subr.mxu0 0.0
      %1404 = vmatpush1.msra.mxu0 0.0
      %1405 = vmatprep.subr.mxu0 0.0
      %1406 = vmatpush1.msra.mxu0 0.0
      %1407 = vmatprep.subr.mxu0 0.0
      %1408 = vmatpush1.msra.mxu0 0.0
      %1409 = vmatprep.subr.mxu0 0.0
      %1410 = vmatpush1.msra.mxu0 0.0
      %1411 = vmatprep.subr.mxu0 0.0
      %1412 = vmatpush1.msra.mxu0 0.0
      %1413 = vmatprep.subr.mxu0 0.0
      %1414 = vmatpush1.msra.mxu0 0.0
      %1415 = vmatprep.subr.mxu0 0.0
      %1416 = vmatpush1.msra.mxu0 0.0
      %1417 = vmatprep.subr.mxu0 0.0
      %1418 = vmatpush1.msra.mxu0 0.0
      %1419 = vmatprep.subr.mxu0 0.0
      %1420 = vmatpush1.msra.mxu0 0.0
      %1421 = vmatprep.subr.mxu0 0.0
      %1422 = vmatpush1.msra.mxu0 0.0
      %1423 = vmatprep.subr.mxu0 0.0
      %1424 = vmatpush1.msra.mxu0 0.0
      %1425 = vmatprep.subr.mxu0 0.0
      %1426 = vmatpush1.msra.mxu0 0.0
      %1427 = vmatprep.subr.mxu0 0.0
      %1428 = vmatpush1.msra.mxu0 0.0
      %1429 = vmatprep.subr.mxu0 0.0
      %1430 = vmatpush1.msra.mxu0 0.0
      %1431 = vmatprep.subr.mxu0 0.0
      %1432 = vmatpush1.msra.mxu0 0.0
      %1433 = vmatprep.subr.mxu0 0.0
      %1434 = vmatpush1.msra.mxu0 0.0
      %1435 = vmatprep.subr.mxu0 0.0
      %1436 = vmatpush1.msra.mxu0 0.0
      %1437 = vmatprep.subr.mxu0 0.0
      %1438 = vmatpush1.msra.mxu0 0.0
      %1439 = vmatprep.subr.mxu0 0.0
      %1440 = vmatpush1.msra.mxu0 0.0
      %1441 = vmatprep.subr.mxu0 0.0
      %1442 = vmatpush1.msra.mxu0 0.0
      %1443 = vmatprep.subr.mxu0 0.0
      %1444 = vmatpush1.msra.mxu0 0.0
      %1445 = vmatprep.mubr.f32.mxu0 0.0
      %1446 = vmatmul.mubr.f32.gmra.mrb[0].mxu0 %v1192
      %v1447 = vpop.f32.mrb[0].mxu0
      %v1448 = vadd.f32 0.0, %v1447
      %v1449 = vpop.f32.mrb[0].mxu0
      %v1450 = vadd.f32 0.0, %v1449
      %1451 = vmatprep.mubr.f32.mxu0 0.0
      %1452 = vmatmul.mubr.f32.gmra.mrb[0].mxu0 %v1195
      %v1453 = vpop.f32.mrb[0].mxu0
      %v1454 = vadd.f32 0.0, %v1453
      %v1455 = vpop.f32.mrb[0].mxu0
      %v1456 = vadd.f32 0.0, %v1455
      %1457 = vmatprep.mubr.f32.mxu0 0.0
      %1458 = vmatmul.mubr.f32.gmra.mrb[0].mxu0 %v1198
      %v1459 = vpop.f32.mrb[0].mxu0
      %v1460 = vadd.f32 0.0, %v1459
      %v1461 = vpop.f32.mrb[0].mxu0
      %v1462 = vadd.f32 0.0, %v1461
      %1463 = vmatprep.mubr.f32.mxu0 0.0
      %1464 = vmatmul.mubr.f32.gmra.mrb[0].mxu0 %v1201
      %v1465 = vpop.f32.mrb[0].mxu0
      %v1466 = vadd.f32 0.0, %v1465
      %v1467 = vpop.f32.mrb[0].mxu0
      %v1468 = vadd.f32 0.0, %v1467
      %1469 = vdwg.mxu0
      %1470 = vmatprep.subr.mxu0 %v1166
      %1471 = vmatpush1.msra.mxu0 %v1165
      %1472 = vmatprep.subr.mxu0 %v1174
      %1473 = vmatpush1.msra.mxu0 %v1173
      %1474 = vmatprep.subr.mxu0 %v1182
      %1475 = vmatpush1.msra.mxu0 %v1181
      %1476 = vmatprep.subr.mxu0 %v1190
      %1477 = vmatpush1.msra.mxu0 %v1189
      %1478 = vmatprep.subr.mxu0 0.0
      %1479 = vmatpush1.msra.mxu0 0.0
      %1480 = vmatprep.subr.mxu0 0.0
      %1481 = vmatpush1.msra.mxu0 0.0
      %1482 = vmatprep.subr.mxu0 0.0
      %1483 = vmatpush1.msra.mxu0 0.0
      %1484 = vmatprep.subr.mxu0 0.0
      %1485 = vmatpush1.msra.mxu0 0.0
      %1486 = vmatprep.subr.mxu0 0.0
      %1487 = vmatpush1.msra.mxu0 0.0
      %1488 = vmatprep.subr.mxu0 0.0
      %1489 = vmatpush1.msra.mxu0 0.0
      %1490 = vmatprep.subr.mxu0 0.0
      %1491 = vmatpush1.msra.mxu0 0.0
      %1492 = vmatprep.subr.mxu0 0.0
      %1493 = vmatpush1.msra.mxu0 0.0
      %1494 = vmatprep.subr.mxu0 0.0
      %1495 = vmatpush1.msra.mxu0 0.0
      %1496 = vmatprep.subr.mxu0 0.0
      %1497 = vmatpush1.msra.mxu0 0.0
      %1498 = vmatprep.subr.mxu0 0.0
      %1499 = vmatpush1.msra.mxu0 0.0
      %1500 = vmatprep.subr.mxu0 0.0
      %1501 = vmatpush1.msra.mxu0 0.0
      %1502 = vmatprep.subr.mxu0 0.0
      %1503 = vmatpush1.msra.mxu0 0.0
      %1504 = vmatprep.subr.mxu0 0.0
      %1505 = vmatpush1.msra.mxu0 0.0
      %1506 = vmatprep.subr.mxu0 0.0
      %1507 = vmatpush1.msra.mxu0 0.0
      %1508 = vmatprep.subr.mxu0 0.0
      %1509 = vmatpush1.msra.mxu0 0.0
      %1510 = vmatprep.subr.mxu0 0.0
      %1511 = vmatpush1.msra.mxu0 0.0
      %1512 = vmatprep.subr.mxu0 0.0
      %1513 = vmatpush1.msra.mxu0 0.0
      %1514 = vmatprep.subr.mxu0 0.0
      %1515 = vmatpush1.msra.mxu0 0.0
      %1516 = vmatprep.subr.mxu0 0.0
      %1517 = vmatpush1.msra.mxu0 0.0
      %1518 = vmatprep.subr.mxu0 0.0
      %1519 = vmatpush1.msra.mxu0 0.0
      %1520 = vmatprep.subr.mxu0 0.0
      %1521 = vmatpush1.msra.mxu0 0.0
      %1522 = vmatprep.subr.mxu0 0.0
      %1523 = vmatpush1.msra.mxu0 0.0
      %1524 = vmatprep.subr.mxu0 0.0
      %1525 = vmatpush1.msra.mxu0 0.0
      %1526 = vmatprep.subr.mxu0 0.0
      %1527 = vmatpush1.msra.mxu0 0.0
      %1528 = vmatprep.subr.mxu0 0.0
      %1529 = vmatpush1.msra.mxu0 0.0
      %1530 = vmatprep.subr.mxu0 0.0
      %1531 = vmatpush1.msra.mxu0 0.0
      %1532 = vmatprep.subr.mxu0 0.0
      %1533 = vmatpush1.msra.mxu0 0.0
      %1534 = vmatprep.mubr.f32.mxu0 0.0
      %1535 = vmatmul.mubr.f32.gmra.mrb[0].mxu0 %v1192
      %v1536 = vpop.f32.mrb[0].mxu0
      %v1537 = vadd.f32 0.0, %v1536
      %v1538 = vpop.f32.mrb[0].mxu0
      %v1539 = vadd.f32 0.0, %v1538
      %1540 = vmatprep.mubr.f32.mxu0 0.0
      %1541 = vmatmul.mubr.f32.gmra.mrb[0].mxu0 %v1195
      %v1542 = vpop.f32.mrb[0].mxu0
      %v1543 = vadd.f32 0.0, %v1542
      %v1544 = vpop.f32.mrb[0].mxu0
      %v1545 = vadd.f32 0.0, %v1544
      %1546 = vmatprep.mubr.f32.mxu0 0.0
      %1547 = vmatmul.mubr.f32.gmra.mrb[0].mxu0 %v1198
      %v1548 = vpop.f32.mrb[0].mxu0
      %v1549 = vadd.f32 0.0, %v1548
      %v1550 = vpop.f32.mrb[0].mxu0
      %v1551 = vadd.f32 0.0, %v1550
      %1552 = vmatprep.mubr.f32.mxu0 0.0
      %1553 = vmatmul.mubr.f32.gmra.mrb[0].mxu0 %v1201
      %v1554 = vpop.f32.mrb[0].mxu0
      %v1555 = vadd.f32 0.0, %v1554
      %v1556 = vpop.f32.mrb[0].mxu0
      %v1557 = vadd.f32 0.0, %v1556
      %1558 = vdwg.mxu0
      %v1559 = vmul.f32 %v514, %v514
      %v1560 = vmul.f32 %v515, %v515
      %v1561 = vmul.f32 %v516, %v516
      %v1562 = vmul.f32 %v517, %v517
      %v1563 = vmul.f32 %v518, %v518
      %v1564 = vmul.f32 %v519, %v519
      %v1565 = vmul.f32 %v520, %v520
      %v1566 = vmul.f32 %v521, %v521
      %v1567 = vmul.f32 %v522, %v522
      %v1568 = vmul.f32 %v523, %v523
      %v1569 = vmul.f32 %v524, %v524
      %v1570 = vmul.f32 %v525, %v525
      %v1571 = vmul.f32 %v526, %v526
      %v1572 = vmul.f32 %v527, %v527
      %v1573 = vmul.f32 %v528, %v528
      %v1574 = vmul.f32 %v529, %v529
      %v1575 = vmul.f32 %v530, %v530
      %v1576 = vmul.f32 %v531, %v531
      %v1577 = vmul.f32 %v532, %v532
      %v1578 = vmul.f32 %v533, %v533
      %v1579 = vmul.f32 %v534, %v534
      %v1580 = vmul.f32 %v535, %v535
      %v1581 = vmul.f32 %v536, %v536
      %v1582 = vmul.f32 %v537, %v537
      %v1583 = vmul.f32 %v538, %v538
      %v1584 = vmul.f32 %v539, %v539
      %v1585 = vmul.f32 %v540, %v540
      %v1586 = vmul.f32 %v541, %v541
      %v1587 = vmul.f32 %v542, %v542
      %v1588 = vmul.f32 %v543, %v543
      %v1589 = vmul.f32 %v544, %v544
      %v1590 = vmul.f32 %v545, %v545
      %v1591 = vsub.f32 1.0, %v1559
      %v1592 = vsub.f32 1.0, %v1560
      %v1593 = vsub.f32 1.0, %v1561
      %v1594 = vsub.f32 1.0, %v1562
      %v1595 = vsub.f32 1.0, %v1563
      %v1596 = vsub.f32 1.0, %v1564
      %v1597 = vsub.f32 1.0, %v1565
      %v1598 = vsub.f32 1.0, %v1566
      %v1599 = vsub.f32 1.0, %v1567
      %v1600 = vsub.f32 1.0, %v1568
      %v1601 = vsub.f32 1.0, %v1569
      %v1602 = vsub.f32 1.0, %v1570
      %v1603 = vsub.f32 1.0, %v1571
      %v1604 = vsub.f32 1.0, %v1572
      %v1605 = vsub.f32 1.0, %v1573
      %v1606 = vsub.f32 1.0, %v1574
      %v1607 = vsub.f32 1.0, %v1575
      %v1608 = vsub.f32 1.0, %v1576
      %v1609 = vsub.f32 1.0, %v1577
      %v1610 = vsub.f32 1.0, %v1578
      %v1611 = vsub.f32 1.0, %v1579
      %v1612 = vsub.f32 1.0, %v1580
      %v1613 = vsub.f32 1.0, %v1581
      %v1614 = vsub.f32 1.0, %v1582
      %v1615 = vsub.f32 1.0, %v1583
      %v1616 = vsub.f32 1.0, %v1584
      %v1617 = vsub.f32 1.0, %v1585
      %v1618 = vsub.f32 1.0, %v1586
      %v1619 = vsub.f32 1.0, %v1587
      %v1620 = vsub.f32 1.0, %v1588
      %v1621 = vsub.f32 1.0, %v1589
      %v1622 = vsub.f32 1.0, %v1590
      %v1623 = vmul.f32 %v1270, %v1591
      %v1624 = vmul.f32 %v1272, %v1592
      %v1625 = vmul.f32 %v1359, %v1593
      %v1626 = vmul.f32 %v1361, %v1594
      %v1627 = vmul.f32 %v1448, %v1595
      %v1628 = vmul.f32 %v1450, %v1596
      %v1629 = vmul.f32 %v1537, %v1597
      %v1630 = vmul.f32 %v1539, %v1598
      %v1631 = vmul.f32 %v1276, %v1599
      %v1632 = vmul.f32 %v1278, %v1600
      %v1633 = vmul.f32 %v1365, %v1601
      %v1634 = vmul.f32 %v1367, %v1602
      %v1635 = vmul.f32 %v1454, %v1603
      %v1636 = vmul.f32 %v1456, %v1604
      %v1637 = vmul.f32 %v1543, %v1605
      %v1638 = vmul.f32 %v1545, %v1606
      %v1639 = vmul.f32 %v1282, %v1607
      %v1640 = vmul.f32 %v1284, %v1608
      %v1641 = vmul.f32 %v1371, %v1609
      %v1642 = vmul.f32 %v1373, %v1610
      %v1643 = vmul.f32 %v1460, %v1611
      %v1644 = vmul.f32 %v1462, %v1612
      %v1645 = vmul.f32 %v1549, %v1613
      %v1646 = vmul.f32 %v1551, %v1614
      %v1647 = vmul.f32 %v1288, %v1615
      %v1648 = vmul.f32 %v1290, %v1616
      %v1649 = vmul.f32 %v1377, %v1617
      %v1650 = vmul.f32 %v1379, %v1618
      %v1651 = vmul.f32 %v1466, %v1619
      %v1652 = vmul.f32 %v1468, %v1620
      %v1653 = vmul.f32 %v1555, %v1621
      %v1654 = vmul.f32 %v1557, %v1622
      %v1655 = vmul.f32 %v191, %v1623
      %v1656 = vmul.f32 %v191, %v1624
      %v1657 = vmul.f32 %v191, %v1625
      %v1658 = vmul.f32 %v191, %v1626
      %v1659 = vmul.f32 %v191, %v1627
      %v1660 = vmul.f32 %v191, %v1628
      %v1661 = vmul.f32 %v191, %v1629
      %v1662 = vmul.f32 %v191, %v1630
      %v1663 = vmul.f32 %v196, %v1631
      %v1664 = vmul.f32 %v196, %v1632
      %v1665 = vmul.f32 %v196, %v1633
      %v1666 = vmul.f32 %v196, %v1634
      %v1667 = vmul.f32 %v196, %v1635
      %v1668 = vmul.f32 %v196, %v1636
      %v1669 = vmul.f32 %v196, %v1637
      %v1670 = vmul.f32 %v196, %v1638
      %v1671 = vmul.f32 %v201, %v1639
      %v1672 = vmul.f32 %v201, %v1640
      %v1673 = vmul.f32 %v201, %v1641
      %v1674 = vmul.f32 %v201, %v1642
      %v1675 = vmul.f32 %v201, %v1643
      %v1676 = vmul.f32 %v201, %v1644
      %v1677 = vmul.f32 %v201, %v1645
      %v1678 = vmul.f32 %v201, %v1646
      %v1679 = vmul.f32 %v206, %v1647
      %v1680 = vmul.f32 %v206, %v1648
      %v1681 = vmul.f32 %v206, %v1649
      %v1682 = vmul.f32 %v206, %v1650
      %v1683 = vmul.f32 %v206, %v1651
      %v1684 = vmul.f32 %v206, %v1652
      %v1685 = vmul.f32 %v206, %v1653
      %v1686 = vmul.f32 %v206, %v1654
      %v1687 = vadd.f32 %v1655, %v1663
      %v1688 = vadd.f32 %v1687, %v1671
      %v1689 = vadd.f32 %v1688, %v1679
      %v1690 = vrot.slane %v1689, 4
      %v1691 = vadd.f32 %v1689, %v1690
      %v1692 = vrot.slane %v1691, 2
      %v1693 = vadd.f32 %v1691, %v1692
      %v1694 = vrot.slane %v1693, 1
      %v1695 = vadd.f32 %v1693, %v1694
      %v1696 = vadd.f32 %v1656, %v1664
      %v1697 = vadd.f32 %v1696, %v1672
      %v1698 = vadd.f32 %v1697, %v1680
      %v1699 = vrot.slane %v1698, 4
      %v1700 = vadd.f32 %v1698, %v1699
      %v1701 = vrot.slane %v1700, 2
      %v1702 = vadd.f32 %v1700, %v1701
      %v1703 = vrot.slane %v1702, 1
      %v1704 = vadd.f32 %v1702, %v1703
      %v1705 = vadd.f32 %v1657, %v1665
      %v1706 = vadd.f32 %v1705, %v1673
      %v1707 = vadd.f32 %v1706, %v1681
      %v1708 = vrot.slane %v1707, 4
      %v1709 = vadd.f32 %v1707, %v1708
      %v1710 = vrot.slane %v1709, 2
      %v1711 = vadd.f32 %v1709, %v1710
      %v1712 = vrot.slane %v1711, 1
      %v1713 = vadd.f32 %v1711, %v1712
      %v1714 = vadd.f32 %v1658, %v1666
      %v1715 = vadd.f32 %v1714, %v1674
      %v1716 = vadd.f32 %v1715, %v1682
      %v1717 = vrot.slane %v1716, 4
      %v1718 = vadd.f32 %v1716, %v1717
      %v1719 = vrot.slane %v1718, 2
      %v1720 = vadd.f32 %v1718, %v1719
      %v1721 = vrot.slane %v1720, 1
      %v1722 = vadd.f32 %v1720, %v1721
      %v1723 = vadd.f32 %v1659, %v1667
      %v1724 = vadd.f32 %v1723, %v1675
      %v1725 = vadd.f32 %v1724, %v1683
      %v1726 = vrot.slane %v1725, 4
      %v1727 = vadd.f32 %v1725, %v1726
      %v1728 = vrot.slane %v1727, 2
      %v1729 = vadd.f32 %v1727, %v1728
      %v1730 = vrot.slane %v1729, 1
      %v1731 = vadd.f32 %v1729, %v1730
      %v1732 = vadd.f32 %v1660, %v1668
      %v1733 = vadd.f32 %v1732, %v1676
      %v1734 = vadd.f32 %v1733, %v1684
      %v1735 = vrot.slane %v1734, 4
      %v1736 = vadd.f32 %v1734, %v1735
      %v1737 = vrot.slane %v1736, 2
      %v1738 = vadd.f32 %v1736, %v1737
      %v1739 = vrot.slane %v1738, 1
      %v1740 = vadd.f32 %v1738, %v1739
      %v1741 = vadd.f32 %v1661, %v1669
      %v1742 = vadd.f32 %v1741, %v1677
      %v1743 = vadd.f32 %v1742, %v1685
      %v1744 = vrot.slane %v1743, 4
      %v1745 = vadd.f32 %v1743, %v1744
      %v1746 = vrot.slane %v1745, 2
      %v1747 = vadd.f32 %v1745, %v1746
      %v1748 = vrot.slane %v1747, 1
      %v1749 = vadd.f32 %v1747, %v1748
      %v1750 = vadd.f32 %v1662, %v1670
      %v1751 = vadd.f32 %v1750, %v1678
      %v1752 = vadd.f32 %v1751, %v1686
      %v1753 = vrot.slane %v1752, 4
      %v1754 = vadd.f32 %v1752, %v1753
      %v1755 = vrot.slane %v1754, 2
      %v1756 = vadd.f32 %v1754, %v1755
      %v1757 = vrot.slane %v1756, 1
      %v1758 = vadd.f32 %v1756, %v1757
      %v1759 = vmul.f32 %v316, %v1623
      %v1760 = vmul.f32 %v316, %v1624
      %v1761 = vmul.f32 %v316, %v1625
      %v1762 = vmul.f32 %v316, %v1626
      %v1763 = vmul.f32 %v316, %v1627
      %v1764 = vmul.f32 %v316, %v1628
      %v1765 = vmul.f32 %v316, %v1629
      %v1766 = vmul.f32 %v316, %v1630
      %v1767 = vmul.f32 %v320, %v1631
      %v1768 = vmul.f32 %v320, %v1632
      %v1769 = vmul.f32 %v320, %v1633
      %v1770 = vmul.f32 %v320, %v1634
      %v1771 = vmul.f32 %v320, %v1635
      %v1772 = vmul.f32 %v320, %v1636
      %v1773 = vmul.f32 %v320, %v1637
      %v1774 = vmul.f32 %v320, %v1638
      %v1775 = vmul.f32 %v324, %v1639
      %v1776 = vmul.f32 %v324, %v1640
      %v1777 = vmul.f32 %v324, %v1641
      %v1778 = vmul.f32 %v324, %v1642
      %v1779 = vmul.f32 %v324, %v1643
      %v1780 = vmul.f32 %v324, %v1644
      %v1781 = vmul.f32 %v324, %v1645
      %v1782 = vmul.f32 %v324, %v1646
      %v1783 = vmul.f32 %v328, %v1647
      %v1784 = vmul.f32 %v328, %v1648
      %v1785 = vmul.f32 %v328, %v1649
      %v1786 = vmul.f32 %v328, %v1650
      %v1787 = vmul.f32 %v328, %v1651
      %v1788 = vmul.f32 %v328, %v1652
      %v1789 = vmul.f32 %v328, %v1653
      %v1790 = vmul.f32 %v328, %v1654
      %v1791 = vadd.f32 %v1759, %v1767
      %v1792 = vadd.f32 %v1791, %v1775
      %v1793 = vadd.f32 %v1792, %v1783
      %v1794 = vrot.slane %v1793, 4
      %v1795 = vadd.f32 %v1793, %v1794
      %v1796 = vrot.slane %v1795, 2
      %v1797 = vadd.f32 %v1795, %v1796
      %v1798 = vrot.slane %v1797, 1
      %v1799 = vadd.f32 %v1797, %v1798
      %v1800 = vadd.f32 %v1760, %v1768
      %v1801 = vadd.f32 %v1800, %v1776
      %v1802 = vadd.f32 %v1801, %v1784
      %v1803 = vrot.slane %v1802, 4
      %v1804 = vadd.f32 %v1802, %v1803
      %v1805 = vrot.slane %v1804, 2
      %v1806 = vadd.f32 %v1804, %v1805
      %v1807 = vrot.slane %v1806, 1
      %v1808 = vadd.f32 %v1806, %v1807
      %v1809 = vadd.f32 %v1761, %v1769
      %v1810 = vadd.f32 %v1809, %v1777
      %v1811 = vadd.f32 %v1810, %v1785
      %v1812 = vrot.slane %v1811, 4
      %v1813 = vadd.f32 %v1811, %v1812
      %v1814 = vrot.slane %v1813, 2
      %v1815 = vadd.f32 %v1813, %v1814
      %v1816 = vrot.slane %v1815, 1
      %v1817 = vadd.f32 %v1815, %v1816
      %v1818 = vadd.f32 %v1762, %v1770
      %v1819 = vadd.f32 %v1818, %v1778
      %v1820 = vadd.f32 %v1819, %v1786
      %v1821 = vrot.slane %v1820, 4
      %v1822 = vadd.f32 %v1820, %v1821
      %v1823 = vrot.slane %v1822, 2
      %v1824 = vadd.f32 %v1822, %v1823
      %v1825 = vrot.slane %v1824, 1
      %v1826 = vadd.f32 %v1824, %v1825
      %v1827 = vadd.f32 %v1763, %v1771
      %v1828 = vadd.f32 %v1827, %v1779
      %v1829 = vadd.f32 %v1828, %v1787
      %v1830 = vrot.slane %v1829, 4
      %v1831 = vadd.f32 %v1829, %v1830
      %v1832 = vrot.slane %v1831, 2
      %v1833 = vadd.f32 %v1831, %v1832
      %v1834 = vrot.slane %v1833, 1
      %v1835 = vadd.f32 %v1833, %v1834
      %v1836 = vadd.f32 %v1764, %v1772
      %v1837 = vadd.f32 %v1836, %v1780
      %v1838 = vadd.f32 %v1837, %v1788
      %v1839 = vrot.slane %v1838, 4
      %v1840 = vadd.f32 %v1838, %v1839
      %v1841 = vrot.slane %v1840, 2
      %v1842 = vadd.f32 %v1840, %v1841
      %v1843 = vrot.slane %v1842, 1
      %v1844 = vadd.f32 %v1842, %v1843
      %v1845 = vadd.f32 %v1765, %v1773
      %v1846 = vadd.f32 %v1845, %v1781
      %v1847 = vadd.f32 %v1846, %v1789
      %v1848 = vrot.slane %v1847, 4
      %v1849 = vadd.f32 %v1847, %v1848
      %v1850 = vrot.slane %v1849, 2
      %v1851 = vadd.f32 %v1849, %v1850
      %v1852 = vrot.slane %v1851, 1
      %v1853 = vadd.f32 %v1851, %v1852
      %v1854 = vadd.f32 %v1766, %v1774
      %v1855 = vadd.f32 %v1854, %v1782
      %v1856 = vadd.f32 %v1855, %v1790
      %v1857 = vrot.slane %v1856, 4
      %v1858 = vadd.f32 %v1856, %v1857
      %v1859 = vrot.slane %v1858, 2
      %v1860 = vadd.f32 %v1858, %v1859
      %v1861 = vrot.slane %v1860, 1
      %v1862 = vadd.f32 %v1860, %v1861
      %vm1863 = vcmask 1040384
      %v1864 = vsel %vm1863, %v1087, %v1695
      %v1865 = vsel %vm1863, %v1088, %v1704
      %v1866 = vsel %vm1863, %v1089, %v1713
      %v1867 = vsel %vm1863, %v1090, %v1722
      %v1868 = vsel %vm1863, %v1091, %v1731
      %v1869 = vsel %vm1863, %v1092, %v1740
      %v1870 = vsel %vm1863, %v1093, %v1749
      %v1871 = vsel %vm1863, %v1094, %v1758
      %vm1872 = vcmask 1041408
      %v1873 = vsel %vm1872, %v1864, %v1799
      %v1874 = vsel %vm1872, %v1865, %v1808
      %v1875 = vsel %vm1872, %v1866, %v1817
      %v1876 = vsel %vm1872, %v1867, %v1826
      %v1877 = vsel %vm1872, %v1868, %v1835
      %v1878 = vsel %vm1872, %v1869, %v1844
      %v1879 = vsel %vm1872, %v1870, %v1853
      %v1880 = vsel %vm1872, %v1871, %v1862
      %v1889 = vcombine.low %v1873, %v1874
      %v1890 = vcombine.low %v1875, %v1876
      %v1891 = vcombine.low %v1877, %v1878
      %v1892 = vcombine.low %v1879, %v1880
      %1897 = vst [vmem:[%s172] sm:$0x77] %v1889
      %1898 = vst [vmem:[%s172 + $0x8] sm:$0x77] %v1890
      %1899 = vst [vmem:[%s172 + $0x10] sm:$0x77] %v1891
      %1900 = vst [vmem:[%s172 + $0x18] sm:$0x77] %v1892
      %s1901 = smul.u32 8, %s14
      %p1902 = scmp.lt.s32.totalorder %s1901, 23
      %s1903 = scalar_select %p1902, %s1901, 23
      %s1904 = smul.addr %s1903, 4
      %s1905 = scalar_lea.vmem %s3, %s1904
      // Predicated region
      $region33: #{pinn_forward.1} parent=31 // pred_check
        %p1906 = pneg %p100
      $region34: #{pinn_forward.1} parent=31 // pred_check_branch
        %1908 = sbr.rel (%p1906) target = $region36
      $region35: #{pinn_forward.1} parent=31 // pred_region
        %s1909 = smul.u32 8, %s14
      $region36: #{pinn_forward.1} parent=31 // pred_fallthru
        _
    $region32: #{pinn_forward.1} parent=5 // pred_fallthru
      _
    %p1910 = scmp.le.s32.totalorder 2, %s9
    // Predicated region
    $region37: #{pinn_forward.1} parent=5 // pred_check
      %p1911 = pneg %p1910
    $region38: #{pinn_forward.1} parent=5 // pred_check_branch
      %1913 = sbr.rel (%p1911) target = $region40
    $region39: #{pinn_forward.1} parent=5 // pred_region
      %s1914 = ssub.s32 %s9, 2
      // Predicated region
      $region41: #{pinn_forward.1} parent=39 // pred_check
        %p1915 = pneg %p106
      $region42: #{pinn_forward.1} parent=39 // pred_check_branch
        %1917 = sbr.rel (%p1915) target = $region44
      $region43: #{pinn_forward.1} parent=39 // pred_region
        %s1918 = smul.u32 8, %s15
        %p1919 = scmp.lt.s32.totalorder %s1918, 23
        %s1920 = scalar_select %p1919, %s1918, 23
        %s1921 = smul.addr %s1920, 4
        %s1922 = scalar_lea.vmem %s3, %s1921
      $region44: #{pinn_forward.1} parent=39 // pred_fallthru
        _
    $region40: #{pinn_forward.1} parent=5 // pred_fallthru
      _
  $region6: #{pinn_forward.1} parent=0 // loop_footer
    %s13 = sadd.s32 1, %s9
  $region7: #{pinn_forward.1} parent=0 // loop_footer_branch
    %8 = sbr.rel target = $region3
  $region8: #{pinn_forward.1} parent=0 // loop_exit
    _

</llo_original>
